<compile_context>
chip_gen: v5e
topology: v5e:2x2
jax: 0.10.0
libtpu: 0.0.40
codegen_flags: <defaults>
</compile_context>

<pallas_src>
import jax
import jax.numpy as jnp
from jax import lax
from jax.experimental import pallas as pl
from jax.experimental.pallas import tpu as pltpu
import numpy as np


# ----------------------------- Pallas kernel -------------------------------

def lstm_mean_kernel(ids_ref, meta_ref,                       # SMEM (prefetch)
                     emb_ref, wih_ref, whh_ref, b_ref,
                     h0_ref, c0_ref, len_ref,                 # VMEM inputs
                     out_ref,                                  # VMEM output
                     xg_ref, zx_ref):                          # VMEM scratch
    """Whole sequence in one invocation.

    ids_ref : (T*B,)    int32 SMEM, time-major flattened token ids
    meta_ref: (1,)      int32 SMEM, max(len)
    emb_ref : (V, 1, E) embedding table (leading-dim indexed for the gather)
    wih_ref : (E, 4H)   fused input->gate weights (gate order i, f, o, g)
    whh_ref : (H, 4H)   fused hidden->gate weights
    b_ref   : (1, 4H)   combined bias (b_ih + b_hh)
    h0/c0   : (B, H)    initial hidden / cell state
    len_ref : (B, 1)    int32 sequence lengths
    out_ref : (B, H)    mean over time of the zero-padded LSTM outputs
    xg_ref  : (T*B, E)  gathered embeddings scratch
    zx_ref  : (T*B, 4H) hoisted input projection scratch
    """
    T_B = xg_ref.shape[0]
    B, H = h0_ref.shape

    # ---- Phase 1: in-kernel embedding gather (ids from SMEM, table in VMEM).
    # Static store row index (Python loop); dynamic leading-dim read on table.
    for i in range(T_B):
        tok = ids_ref[i]                                   # SMEM scalar
        xg_ref[pl.ds(i, 1), :] = emb_ref[tok]              # (1, E) row

    # ---- Phase 2: hoisted input projection: ONE matmul + ONE bias add.
    zx_ref[...] = (jnp.dot(xg_ref[...], wih_ref[...],
                           preferred_element_type=jnp.float32)
                   + b_ref[...])                           # (T*B, 4H)

    # ---- Phase 3: serial recurrence, only h @ Whh per step, t < max(len).
    whh = whh_ref[...]
    lens = len_ref[...]                                    # (B, 1) int32
    max_len = meta_ref[0]                                  # scalar int32

    h0 = h0_ref[...]
    c0 = c0_ref[...]
    acc0 = jnp.zeros_like(h0)

    def step(t, carry):
        h, c, acc = carry
        row = pl.multiple_of(t * B, B)                     # sublane-aligned (B=8)
        z = zx_ref[pl.ds(row, B), :] + jnp.dot(h, whh,
                                               preferred_element_type=jnp.float32)
        s = jax.nn.sigmoid(z[:, :3 * H])                   # (B, 3H): i, f, o
        g = jnp.tanh(z[:, 3 * H:])                         # (B, H)
        i_g = s[:, :H]
        f_g = s[:, H:2 * H]
        o_g = s[:, 2 * H:]

        c_new = f_g * c + i_g * g
        h_new = o_g * jnp.tanh(c_new)

        # packed-sequence semantics: only t < len[b] advances the state;
        # pad_packed_sequence zero-pads the rest (so they add 0 to the sum).
        valid = t < lens                                   # (B, 1) bool
        c = jnp.where(valid, c_new, c)
        h = jnp.where(valid, h_new, h)
        acc = acc + jnp.where(valid, h_new, 0.0)
        return h, c, acc

    _, _, acc = lax.fori_loop(0, max_len, step, (h0, c0, acc0))

    # torch.mean over dim=1 of the pad_packed output divides by max(len).
    # (Assumes max(len) > 0, matching the original module.)
    inv_len = 1.0 / max_len.astype(jnp.float32)
    out_ref[...] = acc * inv_len


def lstm_module_forward(x_ids, len_x, params, hidden_key):
    """JAX wrapper reproducing LSTMModule.forward (num_layers=1)."""
    emb_w = params["embedding"]          # (V, E)
    wih = params["w_ih"]                 # (E, 4H)  fused, gate order i,f,o,g
    whh = params["w_hh"]                 # (H, 4H)
    bias = params["bias"]                # (1, 4H)

    B, T = x_ids.shape
    V, E = emb_w.shape
    H = whh.shape[0]

    # Scalar-prefetch operands (SMEM): time-major flattened token ids, max(len).
    ids_flat = x_ids.T.reshape(-1).astype(jnp.int32)            # (T*B,)
    meta = jnp.max(len_x).astype(jnp.int32).reshape(1)          # (1,)

    # Table reshaped to (V, 1, E) so the in-kernel gather is a leading-dim
    # dynamic index (cheap and always supported).
    emb3 = emb_w.astype(jnp.float32).reshape(V, 1, E)

    # init_hidden(): deterministic stand-in for torch.randn(num_layers, B, H)
    k1, k2 = jax.random.split(hidden_key)
    h0 = jax.random.normal(k1, (B, H), jnp.float32)
    c0 = jax.random.normal(k2, (B, H), jnp.float32)

    lens = len_x.reshape(B, 1).astype(jnp.int32)

    out = pl.pallas_call(
        lstm_mean_kernel,
        out_shape=jax.ShapeDtypeStruct((B, H), jnp.float32),
        grid_spec=pltpu.PrefetchScalarGridSpec(
            num_scalar_prefetch=2,
            grid=(1,),
            in_specs=[
                pl.BlockSpec((V, 1, E), lambda i, ids, ml: (0, 0, 0)),  # emb table
                pl.BlockSpec((E, 4 * H), lambda i, ids, ml: (0, 0)),    # w_ih fused
                pl.BlockSpec((H, 4 * H), lambda i, ids, ml: (0, 0)),    # w_hh fused
                pl.BlockSpec((1, 4 * H), lambda i, ids, ml: (0, 0)),    # bias
                pl.BlockSpec((B, H), lambda i, ids, ml: (0, 0)),        # h0
                pl.BlockSpec((B, H), lambda i, ids, ml: (0, 0)),        # c0
                pl.BlockSpec((B, 1), lambda i, ids, ml: (0, 0)),        # lengths
            ],
            out_specs=pl.BlockSpec((B, H), lambda i, ids, ml: (0, 0)),
            scratch_shapes=[
                pltpu.VMEM((T * B, E), jnp.float32),        # gathered embeddings
                pltpu.VMEM((T * B, 4 * H), jnp.float32),    # hoisted X @ Wih + b
            ],
        ),
        compiler_params=pltpu.CompilerParams(
            dimension_semantics=("arbitrary",)),
    )(ids_flat, meta, emb3, wih, whh, bias, h0, c0, lens)

    return out, (h0, c0)


# --------------------------- pure-JAX reference -----------------------------

def ref_forward(emb_t, lens, wih, whh, bias, h0, c0):
    T = emb_t.shape[0]
    H = h0.shape[1]
    lens2 = lens.reshape(-1, 1).astype(jnp.int32)
    hi = jax.lax.Precision.HIGHEST

    def step(carry, inp):
        h, c, acc = carry
        x_t, t = inp
        z = (jnp.dot(x_t, wih, precision=hi)
             + jnp.dot(h, whh, precision=hi) + bias)
        s = jax.nn.sigmoid(z[:, :3 * H])
        g = jnp.tanh(z[:, 3 * H:])
        i_g, f_g, o_g = s[:, :H], s[:, H:2 * H], s[:, 2 * H:]
        c_new = f_g * c + i_g * g
        h_new = o_g * jnp.tanh(c_new)
        valid = t < lens2
        c = jnp.where(valid, c_new, c)
        h = jnp.where(valid, h_new, h)
        acc = acc + jnp.where(valid, h_new, 0.0)
        return (h, c, acc), None

    (_, _, acc), _ = lax.scan(step, (h0, c0, jnp.zeros_like(h0)),
                              (emb_t, jnp.arange(T)))
    return acc / jnp.max(lens).astype(jnp.float32)


# --------------------------------- main -------------------------------------

if __name__ == "__main__":
    B, T = 8, 10          # batch (full sublane), padded sequence length
    V, E, H = 64, 32, 32  # vocab, embedding_dim, hidden_dim (4H = 128 lanes)

    root = jax.random.PRNGKey(0)
    k_emb, k_wih, k_whh, k_bih, k_bhh, k_x, k_hid = jax.random.split(root, 7)

    # Deterministic parameter init (stand-in for the pickle-loaded embeddings
    # and PyTorch's uniform(-1/sqrt(H), 1/sqrt(H)) LSTM init), in torch layout.
    bound = 1.0 / float(np.sqrt(H))
    emb_weight = jax.random.normal(k_emb, (V, E), jnp.float32)
    w_ih_t = jax.random.uniform(k_wih, (4 * H, E), jnp.float32, -bound, bound)
    w_hh_t = jax.random.uniform(k_whh, (4 * H, H), jnp.float32, -bound, bound)
    b_ih = jax.random.uniform(k_bih, (4 * H,), jnp.float32, -bound, bound)
    b_hh = jax.random.uniform(k_bhh, (4 * H,), jnp.float32, -bound, bound)

    def torch_to_fused(w):
        # torch (4H, in) gate order (i, f, g, o) -> fused (in, 4H) order (i, f, o, g)
        wi, wf, wg, wo = jnp.split(w, 4, axis=0)
        return jnp.concatenate([wi, wf, wo, wg], axis=0).T

    b_sum = b_ih + b_hh
    bi, bf, bg, bo = jnp.split(b_sum, 4)
    bias_fused = jnp.concatenate([bi, bf, bo, bg]).reshape(1, 4 * H)

    params = {
        "embedding": emb_weight,
        "w_ih": torch_to_fused(w_ih_t),   # (E, 4H)
        "w_hh": torch_to_fused(w_hh_t),   # (H, 4H)
        "bias": bias_fused,               # (1, 4H)
    }

    # Inputs: token ids and per-sequence valid lengths (max(len) < T here, so
    # the dynamic loop bound is actually exercised).
    x_ids = jax.random.randint(k_x, (B, T), 0, V, dtype=jnp.int32)
    len_x = jnp.array([8, 5, 3, 6, 9, 7, 2, 9], dtype=jnp.int32)

    out, (h0, c0) = lstm_module_forward(x_ids, len_x, params, k_hid)
    out = jax.block_until_ready(out)

    # Cross-check against a lax.scan reference (same fused layout).
    emb_t = params["embedding"][x_ids.T].astype(jnp.float32)   # (T, B, E)
    ref = ref_forward(emb_t, len_x, params["w_ih"], params["w_hh"],
                      params["bias"], h0, c0)
    np.testing.assert_allclose(np.asarray(out), np.asarray(ref),
                               rtol=1e-3, atol=1e-3)

    print("KERNEL_OK")
</pallas_src>

<mosaic_0001>
module attributes {stable_mosaic.version = 11 : i64} {
  func.func @lstm_mean_kernel(%arg0: i32, %arg1: memref<80xi32, #tpu.memory_space<smem>>, %arg2: memref<1xi32, #tpu.memory_space<smem>>, %arg3: memref<64x1x32xf32, #tpu.memory_space<vmem>>, %arg4: memref<32x128xf32, #tpu.memory_space<vmem>>, %arg5: memref<32x128xf32, #tpu.memory_space<vmem>>, %arg6: memref<1x128xf32, #tpu.memory_space<vmem>>, %arg7: memref<8x32xf32, #tpu.memory_space<vmem>>, %arg8: memref<8x32xf32, #tpu.memory_space<vmem>>, %arg9: memref<8x1xi32, #tpu.memory_space<vmem>>, %arg10: memref<8x32xf32, #tpu.memory_space<vmem>>, %arg11: memref<80x32xf32, #tpu.memory_space<vmem>>, %arg12: memref<80x128xf32, #tpu.memory_space<vmem>>) attributes {dimension_semantics = [#tpu.dimension_semantics<arbitrary>], iteration_bounds = array<i64: 1>, scalar_prefetch = 2 : i64, scratch_operands = 2 : i64, tpu.core_type = #tpu.core_type<tc>, window_params = [{pipeline_mode = #tpu.pipeline_mode<synchronous>, transform_indices = @transform_0, window_bounds = array<i64: 64, 1, 32>}, {pipeline_mode = #tpu.pipeline_mode<synchronous>, transform_indices = @transform_1, window_bounds = array<i64: 32, 128>}, {pipeline_mode = #tpu.pipeline_mode<synchronous>, transform_indices = @transform_2, window_bounds = array<i64: 32, 128>}, {pipeline_mode = #tpu.pipeline_mode<synchronous>, transform_indices = @transform_3, window_bounds = array<i64: 1, 128>}, {pipeline_mode = #tpu.pipeline_mode<synchronous>, transform_indices = @transform_4, window_bounds = array<i64: 8, 32>}, {pipeline_mode = #tpu.pipeline_mode<synchronous>, transform_indices = @transform_5, window_bounds = array<i64: 8, 32>}, {pipeline_mode = #tpu.pipeline_mode<synchronous>, transform_indices = @transform_6, window_bounds = array<i64: 8, 1>}, {pipeline_mode = #tpu.pipeline_mode<synchronous>, transform_indices = @transform_7, window_bounds = array<i64: 8, 32>}]} {
    %c0 = arith.constant 0 : index
    %0 = memref.load %arg1[%c0] : memref<80xi32, #tpu.memory_space<smem>>
    %1 = arith.index_cast %0 : i32 to index
    %c0_0 = arith.constant 0 : index
    %c0_1 = arith.constant 0 : index
    %2 = vector.load %arg3[%1, %c0_0, %c0_1] : memref<64x1x32xf32, #tpu.memory_space<vmem>>, vector<1x1x32xf32>
    %3 = vector.shape_cast %2 : vector<1x1x32xf32> to vector<1x32xf32>
    %c0_2 = arith.constant 0 : index
    %c0_3 = arith.constant 0 : index
    %4 = vector.load %arg11[%c0_2, %c0_3] : memref<80x32xf32, #tpu.memory_space<vmem>>, vector<1x32xf32>
    tpu.vector_store %arg11[%c0_2, %c0_3], %3 {strides = array<i32>} : memref<80x32xf32, #tpu.memory_space<vmem>>, vector<1x32xf32>,
    %c1 = arith.constant 1 : index
    %5 = memref.load %arg1[%c1] : memref<80xi32, #tpu.memory_space<smem>>
    %6 = arith.index_cast %5 : i32 to index
    %c0_4 = arith.constant 0 : index
    %c0_5 = arith.constant 0 : index
    %7 = vector.load %arg3[%6, %c0_4, %c0_5] : memref<64x1x32xf32, #tpu.memory_space<vmem>>, vector<1x1x32xf32>
    %8 = vector.shape_cast %7 : vector<1x1x32xf32> to vector<1x32xf32>
    %c1_6 = arith.constant 1 : index
    %c0_7 = arith.constant 0 : index
    %9 = vector.load %arg11[%c1_6, %c0_7] : memref<80x32xf32, #tpu.memory_space<vmem>>, vector<1x32xf32>
    tpu.vector_store %arg11[%c1_6, %c0_7], %8 {strides = array<i32>} : memref<80x32xf32, #tpu.memory_space<vmem>>, vector<1x32xf32>,
    %c2 = arith.constant 2 : index
    %10 = memref.load %arg1[%c2] : memref<80xi32, #tpu.memory_space<smem>>
    %11 = arith.index_cast %10 : i32 to index
    %c0_8 = arith.constant 0 : index
    %c0_9 = arith.constant 0 : index
    %12 = vector.load %arg3[%11, %c0_8, %c0_9] : memref<64x1x32xf32, #tpu.memory_space<vmem>>, vector<1x1x32xf32>
    %13 = vector.shape_cast %12 : vector<1x1x32xf32> to vector<1x32xf32>
    %c2_10 = arith.constant 2 : index
    %c0_11 = arith.constant 0 : index
    %14 = vector.load %arg11[%c2_10, %c0_11] : memref<80x32xf32, #tpu.memory_space<vmem>>, vector<1x32xf32>
    tpu.vector_store %arg11[%c2_10, %c0_11], %13 {strides = array<i32>} : memref<80x32xf32, #tpu.memory_space<vmem>>, vector<1x32xf32>,
    %c3 = arith.constant 3 : index
    %15 = memref.load %arg1[%c3] : memref<80xi32, #tpu.memory_space<smem>>
    %16 = arith.index_cast %15 : i32 to index
    %c0_12 = arith.constant 0 : index
    %c0_13 = arith.constant 0 : index
    %17 = vector.load %arg3[%16, %c0_12, %c0_13] : memref<64x1x32xf32, #tpu.memory_space<vmem>>, vector<1x1x32xf32>
    %18 = vector.shape_cast %17 : vector<1x1x32xf32> to vector<1x32xf32>
    %c3_14 = arith.constant 3 : index
    %c0_15 = arith.constant 0 : index
    %19 = vector.load %arg11[%c3_14, %c0_15] : memref<80x32xf32, #tpu.memory_space<vmem>>, vector<1x32xf32>
    tpu.vector_store %arg11[%c3_14, %c0_15], %18 {strides = array<i32>} : memref<80x32xf32, #tpu.memory_space<vmem>>, vector<1x32xf32>,
    %c4 = arith.constant 4 : index
    %20 = memref.load %arg1[%c4] : memref<80xi32, #tpu.memory_space<smem>>
    %21 = arith.index_cast %20 : i32 to index
    %c0_16 = arith.constant 0 : index
    %c0_17 = arith.constant 0 : index
    %22 = vector.load %arg3[%21, %c0_16, %c0_17] : memref<64x1x32xf32, #tpu.memory_space<vmem>>, vector<1x1x32xf32>
    %23 = vector.shape_cast %22 : vector<1x1x32xf32> to vector<1x32xf32>
    %c4_18 = arith.constant 4 : index
    %c0_19 = arith.constant 0 : index
    %24 = vector.load %arg11[%c4_18, %c0_19] : memref<80x32xf32, #tpu.memory_space<vmem>>, vector<1x32xf32>
    tpu.vector_store %arg11[%c4_18, %c0_19], %23 {strides = array<i32>} : memref<80x32xf32, #tpu.memory_space<vmem>>, vector<1x32xf32>,
    %c5 = arith.constant 5 : index
    %25 = memref.load %arg1[%c5] : memref<80xi32, #tpu.memory_space<smem>>
    %26 = arith.index_cast %25 : i32 to index
    %c0_20 = arith.constant 0 : index
    %c0_21 = arith.constant 0 : index
    %27 = vector.load %arg3[%26, %c0_20, %c0_21] : memref<64x1x32xf32, #tpu.memory_space<vmem>>, vector<1x1x32xf32>
    %28 = vector.shape_cast %27 : vector<1x1x32xf32> to vector<1x32xf32>
    %c5_22 = arith.constant 5 : index
    %c0_23 = arith.constant 0 : index
    %29 = vector.load %arg11[%c5_22, %c0_23] : memref<80x32xf32, #tpu.memory_space<vmem>>, vector<1x32xf32>
    tpu.vector_store %arg11[%c5_22, %c0_23], %28 {strides = array<i32>} : memref<80x32xf32, #tpu.memory_space<vmem>>, vector<1x32xf32>,
    %c6 = arith.constant 6 : index
    %30 = memref.load %arg1[%c6] : memref<80xi32, #tpu.memory_space<smem>>
    %31 = arith.index_cast %30 : i32 to index
    %c0_24 = arith.constant 0 : index
    %c0_25 = arith.constant 0 : index
    %32 = vector.load %arg3[%31, %c0_24, %c0_25] : memref<64x1x32xf32, #tpu.memory_space<vmem>>, vector<1x1x32xf32>
    %33 = vector.shape_cast %32 : vector<1x1x32xf32> to vector<1x32xf32>
    %c6_26 = arith.constant 6 : index
    %c0_27 = arith.constant 0 : index
    %34 = vector.load %arg11[%c6_26, %c0_27] : memref<80x32xf32, #tpu.memory_space<vmem>>, vector<1x32xf32>
    tpu.vector_store %arg11[%c6_26, %c0_27], %33 {strides = array<i32>} : memref<80x32xf32, #tpu.memory_space<vmem>>, vector<1x32xf32>,
    %c7 = arith.constant 7 : index
    %35 = memref.load %arg1[%c7] : memref<80xi32, #tpu.memory_space<smem>>
    %36 = arith.index_cast %35 : i32 to index
    %c0_28 = arith.constant 0 : index
    %c0_29 = arith.constant 0 : index
    %37 = vector.load %arg3[%36, %c0_28, %c0_29] : memref<64x1x32xf32, #tpu.memory_space<vmem>>, vector<1x1x32xf32>
    %38 = vector.shape_cast %37 : vector<1x1x32xf32> to vector<1x32xf32>
    %c7_30 = arith.constant 7 : index
    %c0_31 = arith.constant 0 : index
    %39 = vector.load %arg11[%c7_30, %c0_31] : memref<80x32xf32, #tpu.memory_space<vmem>>, vector<1x32xf32>
    tpu.vector_store %arg11[%c7_30, %c0_31], %38 {strides = array<i32>} : memref<80x32xf32, #tpu.memory_space<vmem>>, vector<1x32xf32>,
    %c8 = arith.constant 8 : index
    %40 = memref.load %arg1[%c8] : memref<80xi32, #tpu.memory_space<smem>>
    %41 = arith.index_cast %40 : i32 to index
    %c0_32 = arith.constant 0 : index
    %c0_33 = arith.constant 0 : index
    %42 = vector.load %arg3[%41, %c0_32, %c0_33] : memref<64x1x32xf32, #tpu.memory_space<vmem>>, vector<1x1x32xf32>
    %43 = vector.shape_cast %42 : vector<1x1x32xf32> to vector<1x32xf32>
    %c8_34 = arith.constant 8 : index
    %c0_35 = arith.constant 0 : index
    %44 = vector.load %arg11[%c8_34, %c0_35] : memref<80x32xf32, #tpu.memory_space<vmem>>, vector<1x32xf32>
    tpu.vector_store %arg11[%c8_34, %c0_35], %43 {strides = array<i32>} : memref<80x32xf32, #tpu.memory_space<vmem>>, vector<1x32xf32>,
    %c9 = arith.constant 9 : index
    %45 = memref.load %arg1[%c9] : memref<80xi32, #tpu.memory_space<smem>>
    %46 = arith.index_cast %45 : i32 to index
    %c0_36 = arith.constant 0 : index
    %c0_37 = arith.constant 0 : index
    %47 = vector.load %arg3[%46, %c0_36, %c0_37] : memref<64x1x32xf32, #tpu.memory_space<vmem>>, vector<1x1x32xf32>
    %48 = vector.shape_cast %47 : vector<1x1x32xf32> to vector<1x32xf32>
    %c9_38 = arith.constant 9 : index
    %c0_39 = arith.constant 0 : index
    %49 = vector.load %arg11[%c9_38, %c0_39] : memref<80x32xf32, #tpu.memory_space<vmem>>, vector<1x32xf32>
    tpu.vector_store %arg11[%c9_38, %c0_39], %48 {strides = array<i32>} : memref<80x32xf32, #tpu.memory_space<vmem>>, vector<1x32xf32>,
    %c10 = arith.constant 10 : index
    %50 = memref.load %arg1[%c10] : memref<80xi32, #tpu.memory_space<smem>>
    %51 = arith.index_cast %50 : i32 to index
    %c0_40 = arith.constant 0 : index
    %c0_41 = arith.constant 0 : index
    %52 = vector.load %arg3[%51, %c0_40, %c0_41] : memref<64x1x32xf32, #tpu.memory_space<vmem>>, vector<1x1x32xf32>
    %53 = vector.shape_cast %52 : vector<1x1x32xf32> to vector<1x32xf32>
    %c10_42 = arith.constant 10 : index
    %c0_43 = arith.constant 0 : index
    %54 = vector.load %arg11[%c10_42, %c0_43] : memref<80x32xf32, #tpu.memory_space<vmem>>, vector<1x32xf32>
    tpu.vector_store %arg11[%c10_42, %c0_43], %53 {strides = array<i32>} : memref<80x32xf32, #tpu.memory_space<vmem>>, vector<1x32xf32>,
    %c11 = arith.constant 11 : index
    %55 = memref.load %arg1[%c11] : memref<80xi32, #tpu.memory_space<smem>>
    %56 = arith.index_cast %55 : i32 to index
    %c0_44 = arith.constant 0 : index
    %c0_45 = arith.constant 0 : index
    %57 = vector.load %arg3[%56, %c0_44, %c0_45] : memref<64x1x32xf32, #tpu.memory_space<vmem>>, vector<1x1x32xf32>
    %58 = vector.shape_cast %57 : vector<1x1x32xf32> to vector<1x32xf32>
    %c11_46 = arith.constant 11 : index
    %c0_47 = arith.constant 0 : index
    %59 = vector.load %arg11[%c11_46, %c0_47] : memref<80x32xf32, #tpu.memory_space<vmem>>, vector<1x32xf32>
    tpu.vector_store %arg11[%c11_46, %c0_47], %58 {strides = array<i32>} : memref<80x32xf32, #tpu.memory_space<vmem>>, vector<1x32xf32>,
    %c12 = arith.constant 12 : index
    %60 = memref.load %arg1[%c12] : memref<80xi32, #tpu.memory_space<smem>>
    %61 = arith.index_cast %60 : i32 to index
    %c0_48 = arith.constant 0 : index
    %c0_49 = arith.constant 0 : index
    %62 = vector.load %arg3[%61, %c0_48, %c0_49] : memref<64x1x32xf32, #tpu.memory_space<vmem>>, vector<1x1x32xf32>
    %63 = vector.shape_cast %62 : vector<1x1x32xf32> to vector<1x32xf32>
    %c12_50 = arith.constant 12 : index
    %c0_51 = arith.constant 0 : index
    %64 = vector.load %arg11[%c12_50, %c0_51] : memref<80x32xf32, #tpu.memory_space<vmem>>, vector<1x32xf32>
    tpu.vector_store %arg11[%c12_50, %c0_51], %63 {strides = array<i32>} : memref<80x32xf32, #tpu.memory_space<vmem>>, vector<1x32xf32>,
    %c13 = arith.constant 13 : index
    %65 = memref.load %arg1[%c13] : memref<80xi32, #tpu.memory_space<smem>>
    %66 = arith.index_cast %65 : i32 to index
    %c0_52 = arith.constant 0 : index
    %c0_53 = arith.constant 0 : index
    %67 = vector.load %arg3[%66, %c0_52, %c0_53] : memref<64x1x32xf32, #tpu.memory_space<vmem>>, vector<1x1x32xf32>
    %68 = vector.shape_cast %67 : vector<1x1x32xf32> to vector<1x32xf32>
    %c13_54 = arith.constant 13 : index
    %c0_55 = arith.constant 0 : index
    %69 = vector.load %arg11[%c13_54, %c0_55] : memref<80x32xf32, #tpu.memory_space<vmem>>, vector<1x32xf32>
    tpu.vector_store %arg11[%c13_54, %c0_55], %68 {strides = array<i32>} : memref<80x32xf32, #tpu.memory_space<vmem>>, vector<1x32xf32>,
    %c14 = arith.constant 14 : index
    %70 = memref.load %arg1[%c14] : memref<80xi32, #tpu.memory_space<smem>>
    %71 = arith.index_cast %70 : i32 to index
    %c0_56 = arith.constant 0 : index
    %c0_57 = arith.constant 0 : index
    %72 = vector.load %arg3[%71, %c0_56, %c0_57] : memref<64x1x32xf32, #tpu.memory_space<vmem>>, vector<1x1x32xf32>
    %73 = vector.shape_cast %72 : vector<1x1x32xf32> to vector<1x32xf32>
    %c14_58 = arith.constant 14 : index
    %c0_59 = arith.constant 0 : index
    %74 = vector.load %arg11[%c14_58, %c0_59] : memref<80x32xf32, #tpu.memory_space<vmem>>, vector<1x32xf32>
    tpu.vector_store %arg11[%c14_58, %c0_59], %73 {strides = array<i32>} : memref<80x32xf32, #tpu.memory_space<vmem>>, vector<1x32xf32>,
    %c15 = arith.constant 15 : index
    %75 = memref.load %arg1[%c15] : memref<80xi32, #tpu.memory_space<smem>>
    %76 = arith.index_cast %75 : i32 to index
    %c0_60 = arith.constant 0 : index
    %c0_61 = arith.constant 0 : index
    %77 = vector.load %arg3[%76, %c0_60, %c0_61] : memref<64x1x32xf32, #tpu.memory_space<vmem>>, vector<1x1x32xf32>
    %78 = vector.shape_cast %77 : vector<1x1x32xf32> to vector<1x32xf32>
    %c15_62 = arith.constant 15 : index
    %c0_63 = arith.constant 0 : index
    %79 = vector.load %arg11[%c15_62, %c0_63] : memref<80x32xf32, #tpu.memory_space<vmem>>, vector<1x32xf32>
    tpu.vector_store %arg11[%c15_62, %c0_63], %78 {strides = array<i32>} : memref<80x32xf32, #tpu.memory_space<vmem>>, vector<1x32xf32>,
    %c16 = arith.constant 16 : index
    %80 = memref.load %arg1[%c16] : memref<80xi32, #tpu.memory_space<smem>>
    %81 = arith.index_cast %80 : i32 to index
    %c0_64 = arith.constant 0 : index
    %c0_65 = arith.constant 0 : index
    %82 = vector.load %arg3[%81, %c0_64, %c0_65] : memref<64x1x32xf32, #tpu.memory_space<vmem>>, vector<1x1x32xf32>
    %83 = vector.shape_cast %82 : vector<1x1x32xf32> to vector<1x32xf32>
    %c16_66 = arith.constant 16 : index
    %c0_67 = arith.constant 0 : index
    %84 = vector.load %arg11[%c16_66, %c0_67] : memref<80x32xf32, #tpu.memory_space<vmem>>, vector<1x32xf32>
    tpu.vector_store %arg11[%c16_66, %c0_67], %83 {strides = array<i32>} : memref<80x32xf32, #tpu.memory_space<vmem>>, vector<1x32xf32>,
    %c17 = arith.constant 17 : index
    %85 = memref.load %arg1[%c17] : memref<80xi32, #tpu.memory_space<smem>>
    %86 = arith.index_cast %85 : i32 to index
    %c0_68 = arith.constant 0 : index
    %c0_69 = arith.constant 0 : index
    %87 = vector.load %arg3[%86, %c0_68, %c0_69] : memref<64x1x32xf32, #tpu.memory_space<vmem>>, vector<1x1x32xf32>
    %88 = vector.shape_cast %87 : vector<1x1x32xf32> to vector<1x32xf32>
    %c17_70 = arith.constant 17 : index
    %c0_71 = arith.constant 0 : index
    %89 = vector.load %arg11[%c17_70, %c0_71] : memref<80x32xf32, #tpu.memory_space<vmem>>, vector<1x32xf32>
    tpu.vector_store %arg11[%c17_70, %c0_71], %88 {strides = array<i32>} : memref<80x32xf32, #tpu.memory_space<vmem>>, vector<1x32xf32>,
    %c18 = arith.constant 18 : index
    %90 = memref.load %arg1[%c18] : memref<80xi32, #tpu.memory_space<smem>>
    %91 = arith.index_cast %90 : i32 to index
    %c0_72 = arith.constant 0 : index
    %c0_73 = arith.constant 0 : index
    %92 = vector.load %arg3[%91, %c0_72, %c0_73] : memref<64x1x32xf32, #tpu.memory_space<vmem>>, vector<1x1x32xf32>
    %93 = vector.shape_cast %92 : vector<1x1x32xf32> to vector<1x32xf32>
    %c18_74 = arith.constant 18 : index
    %c0_75 = arith.constant 0 : index
    %94 = vector.load %arg11[%c18_74, %c0_75] : memref<80x32xf32, #tpu.memory_space<vmem>>, vector<1x32xf32>
    tpu.vector_store %arg11[%c18_74, %c0_75], %93 {strides = array<i32>} : memref<80x32xf32, #tpu.memory_space<vmem>>, vector<1x32xf32>,
    %c19 = arith.constant 19 : index
    %95 = memref.load %arg1[%c19] : memref<80xi32, #tpu.memory_space<smem>>
    %96 = arith.index_cast %95 : i32 to index
    %c0_76 = arith.constant 0 : index
    %c0_77 = arith.constant 0 : index
    %97 = vector.load %arg3[%96, %c0_76, %c0_77] : memref<64x1x32xf32, #tpu.memory_space<vmem>>, vector<1x1x32xf32>
    %98 = vector.shape_cast %97 : vector<1x1x32xf32> to vector<1x32xf32>
    %c19_78 = arith.constant 19 : index
    %c0_79 = arith.constant 0 : index
    %99 = vector.load %arg11[%c19_78, %c0_79] : memref<80x32xf32, #tpu.memory_space<vmem>>, vector<1x32xf32>
    tpu.vector_store %arg11[%c19_78, %c0_79], %98 {strides = array<i32>} : memref<80x32xf32, #tpu.memory_space<vmem>>, vector<1x32xf32>,
    %c20 = arith.constant 20 : index
    %100 = memref.load %arg1[%c20] : memref<80xi32, #tpu.memory_space<smem>>
    %101 = arith.index_cast %100 : i32 to index
    %c0_80 = arith.constant 0 : index
    %c0_81 = arith.constant 0 : index
    %102 = vector.load %arg3[%101, %c0_80, %c0_81] : memref<64x1x32xf32, #tpu.memory_space<vmem>>, vector<1x1x32xf32>
    %103 = vector.shape_cast %102 : vector<1x1x32xf32> to vector<1x32xf32>
    %c20_82 = arith.constant 20 : index
    %c0_83 = arith.constant 0 : index
    %104 = vector.load %arg11[%c20_82, %c0_83] : memref<80x32xf32, #tpu.memory_space<vmem>>, vector<1x32xf32>
    tpu.vector_store %arg11[%c20_82, %c0_83], %103 {strides = array<i32>} : memref<80x32xf32, #tpu.memory_space<vmem>>, vector<1x32xf32>,
    %c21 = arith.constant 21 : index
    %105 = memref.load %arg1[%c21] : memref<80xi32, #tpu.memory_space<smem>>
    %106 = arith.index_cast %105 : i32 to index
    %c0_84 = arith.constant 0 : index
    %c0_85 = arith.constant 0 : index
    %107 = vector.load %arg3[%106, %c0_84, %c0_85] : memref<64x1x32xf32, #tpu.memory_space<vmem>>, vector<1x1x32xf32>
    %108 = vector.shape_cast %107 : vector<1x1x32xf32> to vector<1x32xf32>
    %c21_86 = arith.constant 21 : index
    %c0_87 = arith.constant 0 : index
    %109 = vector.load %arg11[%c21_86, %c0_87] : memref<80x32xf32, #tpu.memory_space<vmem>>, vector<1x32xf32>
    tpu.vector_store %arg11[%c21_86, %c0_87], %108 {strides = array<i32>} : memref<80x32xf32, #tpu.memory_space<vmem>>, vector<1x32xf32>,
    %c22 = arith.constant 22 : index
    %110 = memref.load %arg1[%c22] : memref<80xi32, #tpu.memory_space<smem>>
    %111 = arith.index_cast %110 : i32 to index
    %c0_88 = arith.constant 0 : index
    %c0_89 = arith.constant 0 : index
    %112 = vector.load %arg3[%111, %c0_88, %c0_89] : memref<64x1x32xf32, #tpu.memory_space<vmem>>, vector<1x1x32xf32>
    %113 = vector.shape_cast %112 : vector<1x1x32xf32> to vector<1x32xf32>
    %c22_90 = arith.constant 22 : index
    %c0_91 = arith.constant 0 : index
    %114 = vector.load %arg11[%c22_90, %c0_91] : memref<80x32xf32, #tpu.memory_space<vmem>>, vector<1x32xf32>
    tpu.vector_store %arg11[%c22_90, %c0_91], %113 {strides = array<i32>} : memref<80x32xf32, #tpu.memory_space<vmem>>, vector<1x32xf32>,
    %c23 = arith.constant 23 : index
    %115 = memref.load %arg1[%c23] : memref<80xi32, #tpu.memory_space<smem>>
    %116 = arith.index_cast %115 : i32 to index
    %c0_92 = arith.constant 0 : index
    %c0_93 = arith.constant 0 : index
    %117 = vector.load %arg3[%116, %c0_92, %c0_93] : memref<64x1x32xf32, #tpu.memory_space<vmem>>, vector<1x1x32xf32>
    %118 = vector.shape_cast %117 : vector<1x1x32xf32> to vector<1x32xf32>
    %c23_94 = arith.constant 23 : index
    %c0_95 = arith.constant 0 : index
    %119 = vector.load %arg11[%c23_94, %c0_95] : memref<80x32xf32, #tpu.memory_space<vmem>>, vector<1x32xf32>
    tpu.vector_store %arg11[%c23_94, %c0_95], %118 {strides = array<i32>} : memref<80x32xf32, #tpu.memory_space<vmem>>, vector<1x32xf32>,
    %c24 = arith.constant 24 : index
    %120 = memref.load %arg1[%c24] : memref<80xi32, #tpu.memory_space<smem>>
    %121 = arith.index_cast %120 : i32 to index
    %c0_96 = arith.constant 0 : index
    %c0_97 = arith.constant 0 : index
    %122 = vector.load %arg3[%121, %c0_96, %c0_97] : memref<64x1x32xf32, #tpu.memory_space<vmem>>, vector<1x1x32xf32>
    %123 = vector.shape_cast %122 : vector<1x1x32xf32> to vector<1x32xf32>
    %c24_98 = arith.constant 24 : index
    %c0_99 = arith.constant 0 : index
    %124 = vector.load %arg11[%c24_98, %c0_99] : memref<80x32xf32, #tpu.memory_space<vmem>>, vector<1x32xf32>
    tpu.vector_store %arg11[%c24_98, %c0_99], %123 {strides = array<i32>} : memref<80x32xf32, #tpu.memory_space<vmem>>, vector<1x32xf32>,
    %c25 = arith.constant 25 : index
    %125 = memref.load %arg1[%c25] : memref<80xi32, #tpu.memory_space<smem>>
    %126 = arith.index_cast %125 : i32 to index
    %c0_100 = arith.constant 0 : index
    %c0_101 = arith.constant 0 : index
    %127 = vector.load %arg3[%126, %c0_100, %c0_101] : memref<64x1x32xf32, #tpu.memory_space<vmem>>, vector<1x1x32xf32>
    %128 = vector.shape_cast %127 : vector<1x1x32xf32> to vector<1x32xf32>
    %c25_102 = arith.constant 25 : index
    %c0_103 = arith.constant 0 : index
    %129 = vector.load %arg11[%c25_102, %c0_103] : memref<80x32xf32, #tpu.memory_space<vmem>>, vector<1x32xf32>
    tpu.vector_store %arg11[%c25_102, %c0_103], %128 {strides = array<i32>} : memref<80x32xf32, #tpu.memory_space<vmem>>, vector<1x32xf32>,
    %c26 = arith.constant 26 : index
    %130 = memref.load %arg1[%c26] : memref<80xi32, #tpu.memory_space<smem>>
    %131 = arith.index_cast %130 : i32 to index
    %c0_104 = arith.constant 0 : index
    %c0_105 = arith.constant 0 : index
    %132 = vector.load %arg3[%131, %c0_104, %c0_105] : memref<64x1x32xf32, #tpu.memory_space<vmem>>, vector<1x1x32xf32>
    %133 = vector.shape_cast %132 : vector<1x1x32xf32> to vector<1x32xf32>
    %c26_106 = arith.constant 26 : index
    %c0_107 = arith.constant 0 : index
    %134 = vector.load %arg11[%c26_106, %c0_107] : memref<80x32xf32, #tpu.memory_space<vmem>>, vector<1x32xf32>
    tpu.vector_store %arg11[%c26_106, %c0_107], %133 {strides = array<i32>} : memref<80x32xf32, #tpu.memory_space<vmem>>, vector<1x32xf32>,
    %c27 = arith.constant 27 : index
    %135 = memref.load %arg1[%c27] : memref<80xi32, #tpu.memory_space<smem>>
    %136 = arith.index_cast %135 : i32 to index
    %c0_108 = arith.constant 0 : index
    %c0_109 = arith.constant 0 : index
    %137 = vector.load %arg3[%136, %c0_108, %c0_109] : memref<64x1x32xf32, #tpu.memory_space<vmem>>, vector<1x1x32xf32>
    %138 = vector.shape_cast %137 : vector<1x1x32xf32> to vector<1x32xf32>
    %c27_110 = arith.constant 27 : index
    %c0_111 = arith.constant 0 : index
    %139 = vector.load %arg11[%c27_110, %c0_111] : memref<80x32xf32, #tpu.memory_space<vmem>>, vector<1x32xf32>
    tpu.vector_store %arg11[%c27_110, %c0_111], %138 {strides = array<i32>} : memref<80x32xf32, #tpu.memory_space<vmem>>, vector<1x32xf32>,
    %c28 = arith.constant 28 : index
    %140 = memref.load %arg1[%c28] : memref<80xi32, #tpu.memory_space<smem>>
    %141 = arith.index_cast %140 : i32 to index
    %c0_112 = arith.constant 0 : index
    %c0_113 = arith.constant 0 : index
    %142 = vector.load %arg3[%141, %c0_112, %c0_113] : memref<64x1x32xf32, #tpu.memory_space<vmem>>, vector<1x1x32xf32>
    %143 = vector.shape_cast %142 : vector<1x1x32xf32> to vector<1x32xf32>
    %c28_114 = arith.constant 28 : index
    %c0_115 = arith.constant 0 : index
    %144 = vector.load %arg11[%c28_114, %c0_115] : memref<80x32xf32, #tpu.memory_space<vmem>>, vector<1x32xf32>
    tpu.vector_store %arg11[%c28_114, %c0_115], %143 {strides = array<i32>} : memref<80x32xf32, #tpu.memory_space<vmem>>, vector<1x32xf32>,
    %c29 = arith.constant 29 : index
    %145 = memref.load %arg1[%c29] : memref<80xi32, #tpu.memory_space<smem>>
    %146 = arith.index_cast %145 : i32 to index
    %c0_116 = arith.constant 0 : index
    %c0_117 = arith.constant 0 : index
    %147 = vector.load %arg3[%146, %c0_116, %c0_117] : memref<64x1x32xf32, #tpu.memory_space<vmem>>, vector<1x1x32xf32>
    %148 = vector.shape_cast %147 : vector<1x1x32xf32> to vector<1x32xf32>
    %c29_118 = arith.constant 29 : index
    %c0_119 = arith.constant 0 : index
    %149 = vector.load %arg11[%c29_118, %c0_119] : memref<80x32xf32, #tpu.memory_space<vmem>>, vector<1x32xf32>
    tpu.vector_store %arg11[%c29_118, %c0_119], %148 {strides = array<i32>} : memref<80x32xf32, #tpu.memory_space<vmem>>, vector<1x32xf32>,
    %c30 = arith.constant 30 : index
    %150 = memref.load %arg1[%c30] : memref<80xi32, #tpu.memory_space<smem>>
    %151 = arith.index_cast %150 : i32 to index
    %c0_120 = arith.constant 0 : index
    %c0_121 = arith.constant 0 : index
    %152 = vector.load %arg3[%151, %c0_120, %c0_121] : memref<64x1x32xf32, #tpu.memory_space<vmem>>, vector<1x1x32xf32>
    %153 = vector.shape_cast %152 : vector<1x1x32xf32> to vector<1x32xf32>
    %c30_122 = arith.constant 30 : index
    %c0_123 = arith.constant 0 : index
    %154 = vector.load %arg11[%c30_122, %c0_123] : memref<80x32xf32, #tpu.memory_space<vmem>>, vector<1x32xf32>
    tpu.vector_store %arg11[%c30_122, %c0_123], %153 {strides = array<i32>} : memref<80x32xf32, #tpu.memory_space<vmem>>, vector<1x32xf32>,
    %c31 = arith.constant 31 : index
    %155 = memref.load %arg1[%c31] : memref<80xi32, #tpu.memory_space<smem>>
    %156 = arith.index_cast %155 : i32 to index
    %c0_124 = arith.constant 0 : index
    %c0_125 = arith.constant 0 : index
    %157 = vector.load %arg3[%156, %c0_124, %c0_125] : memref<64x1x32xf32, #tpu.memory_space<vmem>>, vector<1x1x32xf32>
    %158 = vector.shape_cast %157 : vector<1x1x32xf32> to vector<1x32xf32>
    %c31_126 = arith.constant 31 : index
    %c0_127 = arith.constant 0 : index
    %159 = vector.load %arg11[%c31_126, %c0_127] : memref<80x32xf32, #tpu.memory_space<vmem>>, vector<1x32xf32>
    tpu.vector_store %arg11[%c31_126, %c0_127], %158 {strides = array<i32>} : memref<80x32xf32, #tpu.memory_space<vmem>>, vector<1x32xf32>,
    %c32 = arith.constant 32 : index
    %160 = memref.load %arg1[%c32] : memref<80xi32, #tpu.memory_space<smem>>
    %161 = arith.index_cast %160 : i32 to index
    %c0_128 = arith.constant 0 : index
    %c0_129 = arith.constant 0 : index
    %162 = vector.load %arg3[%161, %c0_128, %c0_129] : memref<64x1x32xf32, #tpu.memory_space<vmem>>, vector<1x1x32xf32>
    %163 = vector.shape_cast %162 : vector<1x1x32xf32> to vector<1x32xf32>
    %c32_130 = arith.constant 32 : index
    %c0_131 = arith.constant 0 : index
    %164 = vector.load %arg11[%c32_130, %c0_131] : memref<80x32xf32, #tpu.memory_space<vmem>>, vector<1x32xf32>
    tpu.vector_store %arg11[%c32_130, %c0_131], %163 {strides = array<i32>} : memref<80x32xf32, #tpu.memory_space<vmem>>, vector<1x32xf32>,
    %c33 = arith.constant 33 : index
    %165 = memref.load %arg1[%c33] : memref<80xi32, #tpu.memory_space<smem>>
    %166 = arith.index_cast %165 : i32 to index
    %c0_132 = arith.constant 0 : index
    %c0_133 = arith.constant 0 : index
    %167 = vector.load %arg3[%166, %c0_132, %c0_133] : memref<64x1x32xf32, #tpu.memory_space<vmem>>, vector<1x1x32xf32>
    %168 = vector.shape_cast %167 : vector<1x1x32xf32> to vector<1x32xf32>
    %c33_134 = arith.constant 33 : index
    %c0_135 = arith.constant 0 : index
    %169 = vector.load %arg11[%c33_134, %c0_135] : memref<80x32xf32, #tpu.memory_space<vmem>>, vector<1x32xf32>
    tpu.vector_store %arg11[%c33_134, %c0_135], %168 {strides = array<i32>} : memref<80x32xf32, #tpu.memory_space<vmem>>, vector<1x32xf32>,
    %c34 = arith.constant 34 : index
    %170 = memref.load %arg1[%c34] : memref<80xi32, #tpu.memory_space<smem>>
    %171 = arith.index_cast %170 : i32 to index
    %c0_136 = arith.constant 0 : index
    %c0_137 = arith.constant 0 : index
    %172 = vector.load %arg3[%171, %c0_136, %c0_137] : memref<64x1x32xf32, #tpu.memory_space<vmem>>, vector<1x1x32xf32>
    %173 = vector.shape_cast %172 : vector<1x1x32xf32> to vector<1x32xf32>
    %c34_138 = arith.constant 34 : index
    %c0_139 = arith.constant 0 : index
    %174 = vector.load %arg11[%c34_138, %c0_139] : memref<80x32xf32, #tpu.memory_space<vmem>>, vector<1x32xf32>
    tpu.vector_store %arg11[%c34_138, %c0_139], %173 {strides = array<i32>} : memref<80x32xf32, #tpu.memory_space<vmem>>, vector<1x32xf32>,
    %c35 = arith.constant 35 : index
    %175 = memref.load %arg1[%c35] : memref<80xi32, #tpu.memory_space<smem>>
    %176 = arith.index_cast %175 : i32 to index
    %c0_140 = arith.constant 0 : index
    %c0_141 = arith.constant 0 : index
    %177 = vector.load %arg3[%176, %c0_140, %c0_141] : memref<64x1x32xf32, #tpu.memory_space<vmem>>, vector<1x1x32xf32>
    %178 = vector.shape_cast %177 : vector<1x1x32xf32> to vector<1x32xf32>
    %c35_142 = arith.constant 35 : index
    %c0_143 = arith.constant 0 : index
    %179 = vector.load %arg11[%c35_142, %c0_143] : memref<80x32xf32, #tpu.memory_space<vmem>>, vector<1x32xf32>
    tpu.vector_store %arg11[%c35_142, %c0_143], %178 {strides = array<i32>} : memref<80x32xf32, #tpu.memory_space<vmem>>, vector<1x32xf32>,
    %c36 = arith.constant 36 : index
    %180 = memref.load %arg1[%c36] : memref<80xi32, #tpu.memory_space<smem>>
    %181 = arith.index_cast %180 : i32 to index
    %c0_144 = arith.constant 0 : index
    %c0_145 = arith.constant 0 : index
    %182 = vector.load %arg3[%181, %c0_144, %c0_145] : memref<64x1x32xf32, #tpu.memory_space<vmem>>, vector<1x1x32xf32>
    %183 = vector.shape_cast %182 : vector<1x1x32xf32> to vector<1x32xf32>
    %c36_146 = arith.constant 36 : index
    %c0_147 = arith.constant 0 : index
    %184 = vector.load %arg11[%c36_146, %c0_147] : memref<80x32xf32, #tpu.memory_space<vmem>>, vector<1x32xf32>
    tpu.vector_store %arg11[%c36_146, %c0_147], %183 {strides = array<i32>} : memref<80x32xf32, #tpu.memory_space<vmem>>, vector<1x32xf32>,
    %c37 = arith.constant 37 : index
    %185 = memref.load %arg1[%c37] : memref<80xi32, #tpu.memory_space<smem>>
    %186 = arith.index_cast %185 : i32 to index
    %c0_148 = arith.constant 0 : index
    %c0_149 = arith.constant 0 : index
    %187 = vector.load %arg3[%186, %c0_148, %c0_149] : memref<64x1x32xf32, #tpu.memory_space<vmem>>, vector<1x1x32xf32>
    %188 = vector.shape_cast %187 : vector<1x1x32xf32> to vector<1x32xf32>
    %c37_150 = arith.constant 37 : index
    %c0_151 = arith.constant 0 : index
    %189 = vector.load %arg11[%c37_150, %c0_151] : memref<80x32xf32, #tpu.memory_space<vmem>>, vector<1x32xf32>
    tpu.vector_store %arg11[%c37_150, %c0_151], %188 {strides = array<i32>} : memref<80x32xf32, #tpu.memory_space<vmem>>, vector<1x32xf32>,
    %c38 = arith.constant 38 : index
    %190 = memref.load %arg1[%c38] : memref<80xi32, #tpu.memory_space<smem>>
    %191 = arith.index_cast %190 : i32 to index
    %c0_152 = arith.constant 0 : index
    %c0_153 = arith.constant 0 : index
    %192 = vector.load %arg3[%191, %c0_152, %c0_153] : memref<64x1x32xf32, #tpu.memory_space<vmem>>, vector<1x1x32xf32>
    %193 = vector.shape_cast %192 : vector<1x1x32xf32> to vector<1x32xf32>
    %c38_154 = arith.constant 38 : index
    %c0_155 = arith.constant 0 : index
    %194 = vector.load %arg11[%c38_154, %c0_155] : memref<80x32xf32, #tpu.memory_space<vmem>>, vector<1x32xf32>
    tpu.vector_store %arg11[%c38_154, %c0_155], %193 {strides = array<i32>} : memref<80x32xf32, #tpu.memory_space<vmem>>, vector<1x32xf32>,
    %c39 = arith.constant 39 : index
    %195 = memref.load %arg1[%c39] : memref<80xi32, #tpu.memory_space<smem>>
    %196 = arith.index_cast %195 : i32 to index
    %c0_156 = arith.constant 0 : index
    %c0_157 = arith.constant 0 : index
    %197 = vector.load %arg3[%196, %c0_156, %c0_157] : memref<64x1x32xf32, #tpu.memory_space<vmem>>, vector<1x1x32xf32>
    %198 = vector.shape_cast %197 : vector<1x1x32xf32> to vector<1x32xf32>
    %c39_158 = arith.constant 39 : index
    %c0_159 = arith.constant 0 : index
    %199 = vector.load %arg11[%c39_158, %c0_159] : memref<80x32xf32, #tpu.memory_space<vmem>>, vector<1x32xf32>
    tpu.vector_store %arg11[%c39_158, %c0_159], %198 {strides = array<i32>} : memref<80x32xf32, #tpu.memory_space<vmem>>, vector<1x32xf32>,
    %c40 = arith.constant 40 : index
    %200 = memref.load %arg1[%c40] : memref<80xi32, #tpu.memory_space<smem>>
    %201 = arith.index_cast %200 : i32 to index
    %c0_160 = arith.constant 0 : index
    %c0_161 = arith.constant 0 : index
    %202 = vector.load %arg3[%201, %c0_160, %c0_161] : memref<64x1x32xf32, #tpu.memory_space<vmem>>, vector<1x1x32xf32>
    %203 = vector.shape_cast %202 : vector<1x1x32xf32> to vector<1x32xf32>
    %c40_162 = arith.constant 40 : index
    %c0_163 = arith.constant 0 : index
    %204 = vector.load %arg11[%c40_162, %c0_163] : memref<80x32xf32, #tpu.memory_space<vmem>>, vector<1x32xf32>
    tpu.vector_store %arg11[%c40_162, %c0_163], %203 {strides = array<i32>} : memref<80x32xf32, #tpu.memory_space<vmem>>, vector<1x32xf32>,
    %c41 = arith.constant 41 : index
    %205 = memref.load %arg1[%c41] : memref<80xi32, #tpu.memory_space<smem>>
    %206 = arith.index_cast %205 : i32 to index
    %c0_164 = arith.constant 0 : index
    %c0_165 = arith.constant 0 : index
    %207 = vector.load %arg3[%206, %c0_164, %c0_165] : memref<64x1x32xf32, #tpu.memory_space<vmem>>, vector<1x1x32xf32>
    %208 = vector.shape_cast %207 : vector<1x1x32xf32> to vector<1x32xf32>
    %c41_166 = arith.constant 41 : index
    %c0_167 = arith.constant 0 : index
    %209 = vector.load %arg11[%c41_166, %c0_167] : memref<80x32xf32, #tpu.memory_space<vmem>>, vector<1x32xf32>
    tpu.vector_store %arg11[%c41_166, %c0_167], %208 {strides = array<i32>} : memref<80x32xf32, #tpu.memory_space<vmem>>, vector<1x32xf32>,
    %c42 = arith.constant 42 : index
    %210 = memref.load %arg1[%c42] : memref<80xi32, #tpu.memory_space<smem>>
    %211 = arith.index_cast %210 : i32 to index
    %c0_168 = arith.constant 0 : index
    %c0_169 = arith.constant 0 : index
    %212 = vector.load %arg3[%211, %c0_168, %c0_169] : memref<64x1x32xf32, #tpu.memory_space<vmem>>, vector<1x1x32xf32>
    %213 = vector.shape_cast %212 : vector<1x1x32xf32> to vector<1x32xf32>
    %c42_170 = arith.constant 42 : index
    %c0_171 = arith.constant 0 : index
    %214 = vector.load %arg11[%c42_170, %c0_171] : memref<80x32xf32, #tpu.memory_space<vmem>>, vector<1x32xf32>
    tpu.vector_store %arg11[%c42_170, %c0_171], %213 {strides = array<i32>} : memref<80x32xf32, #tpu.memory_space<vmem>>, vector<1x32xf32>,
    %c43 = arith.constant 43 : index
    %215 = memref.load %arg1[%c43] : memref<80xi32, #tpu.memory_space<smem>>
    %216 = arith.index_cast %215 : i32 to index
    %c0_172 = arith.constant 0 : index
    %c0_173 = arith.constant 0 : index
    %217 = vector.load %arg3[%216, %c0_172, %c0_173] : memref<64x1x32xf32, #tpu.memory_space<vmem>>, vector<1x1x32xf32>
    %218 = vector.shape_cast %217 : vector<1x1x32xf32> to vector<1x32xf32>
    %c43_174 = arith.constant 43 : index
    %c0_175 = arith.constant 0 : index
    %219 = vector.load %arg11[%c43_174, %c0_175] : memref<80x32xf32, #tpu.memory_space<vmem>>, vector<1x32xf32>
    tpu.vector_store %arg11[%c43_174, %c0_175], %218 {strides = array<i32>} : memref<80x32xf32, #tpu.memory_space<vmem>>, vector<1x32xf32>,
    %c44 = arith.constant 44 : index
    %220 = memref.load %arg1[%c44] : memref<80xi32, #tpu.memory_space<smem>>
    %221 = arith.index_cast %220 : i32 to index
    %c0_176 = arith.constant 0 : index
    %c0_177 = arith.constant 0 : index
    %222 = vector.load %arg3[%221, %c0_176, %c0_177] : memref<64x1x32xf32, #tpu.memory_space<vmem>>, vector<1x1x32xf32>
    %223 = vector.shape_cast %222 : vector<1x1x32xf32> to vector<1x32xf32>
    %c44_178 = arith.constant 44 : index
    %c0_179 = arith.constant 0 : index
    %224 = vector.load %arg11[%c44_178, %c0_179] : memref<80x32xf32, #tpu.memory_space<vmem>>, vector<1x32xf32>
    tpu.vector_store %arg11[%c44_178, %c0_179], %223 {strides = array<i32>} : memref<80x32xf32, #tpu.memory_space<vmem>>, vector<1x32xf32>,
    %c45 = arith.constant 45 : index
    %225 = memref.load %arg1[%c45] : memref<80xi32, #tpu.memory_space<smem>>
    %226 = arith.index_cast %225 : i32 to index
    %c0_180 = arith.constant 0 : index
    %c0_181 = arith.constant 0 : index
    %227 = vector.load %arg3[%226, %c0_180, %c0_181] : memref<64x1x32xf32, #tpu.memory_space<vmem>>, vector<1x1x32xf32>
    %228 = vector.shape_cast %227 : vector<1x1x32xf32> to vector<1x32xf32>
    %c45_182 = arith.constant 45 : index
    %c0_183 = arith.constant 0 : index
    %229 = vector.load %arg11[%c45_182, %c0_183] : memref<80x32xf32, #tpu.memory_space<vmem>>, vector<1x32xf32>
    tpu.vector_store %arg11[%c45_182, %c0_183], %228 {strides = array<i32>} : memref<80x32xf32, #tpu.memory_space<vmem>>, vector<1x32xf32>,
    %c46 = arith.constant 46 : index
    %230 = memref.load %arg1[%c46] : memref<80xi32, #tpu.memory_space<smem>>
    %231 = arith.index_cast %230 : i32 to index
    %c0_184 = arith.constant 0 : index
    %c0_185 = arith.constant 0 : index
    %232 = vector.load %arg3[%231, %c0_184, %c0_185] : memref<64x1x32xf32, #tpu.memory_space<vmem>>, vector<1x1x32xf32>
    %233 = vector.shape_cast %232 : vector<1x1x32xf32> to vector<1x32xf32>
    %c46_186 = arith.constant 46 : index
    %c0_187 = arith.constant 0 : index
    %234 = vector.load %arg11[%c46_186, %c0_187] : memref<80x32xf32, #tpu.memory_space<vmem>>, vector<1x32xf32>
    tpu.vector_store %arg11[%c46_186, %c0_187], %233 {strides = array<i32>} : memref<80x32xf32, #tpu.memory_space<vmem>>, vector<1x32xf32>,
    %c47 = arith.constant 47 : index
    %235 = memref.load %arg1[%c47] : memref<80xi32, #tpu.memory_space<smem>>
    %236 = arith.index_cast %235 : i32 to index
    %c0_188 = arith.constant 0 : index
    %c0_189 = arith.constant 0 : index
    %237 = vector.load %arg3[%236, %c0_188, %c0_189] : memref<64x1x32xf32, #tpu.memory_space<vmem>>, vector<1x1x32xf32>
    %238 = vector.shape_cast %237 : vector<1x1x32xf32> to vector<1x32xf32>
    %c47_190 = arith.constant 47 : index
    %c0_191 = arith.constant 0 : index
    %239 = vector.load %arg11[%c47_190, %c0_191] : memref<80x32xf32, #tpu.memory_space<vmem>>, vector<1x32xf32>
    tpu.vector_store %arg11[%c47_190, %c0_191], %238 {strides = array<i32>} : memref<80x32xf32, #tpu.memory_space<vmem>>, vector<1x32xf32>,
    %c48 = arith.constant 48 : index
    %240 = memref.load %arg1[%c48] : memref<80xi32, #tpu.memory_space<smem>>
    %241 = arith.index_cast %240 : i32 to index
    %c0_192 = arith.constant 0 : index
    %c0_193 = arith.constant 0 : index
    %242 = vector.load %arg3[%241, %c0_192, %c0_193] : memref<64x1x32xf32, #tpu.memory_space<vmem>>, vector<1x1x32xf32>
    %243 = vector.shape_cast %242 : vector<1x1x32xf32> to vector<1x32xf32>
    %c48_194 = arith.constant 48 : index
    %c0_195 = arith.constant 0 : index
    %244 = vector.load %arg11[%c48_194, %c0_195] : memref<80x32xf32, #tpu.memory_space<vmem>>, vector<1x32xf32>
    tpu.vector_store %arg11[%c48_194, %c0_195], %243 {strides = array<i32>} : memref<80x32xf32, #tpu.memory_space<vmem>>, vector<1x32xf32>,
    %c49 = arith.constant 49 : index
    %245 = memref.load %arg1[%c49] : memref<80xi32, #tpu.memory_space<smem>>
    %246 = arith.index_cast %245 : i32 to index
    %c0_196 = arith.constant 0 : index
    %c0_197 = arith.constant 0 : index
    %247 = vector.load %arg3[%246, %c0_196, %c0_197] : memref<64x1x32xf32, #tpu.memory_space<vmem>>, vector<1x1x32xf32>
    %248 = vector.shape_cast %247 : vector<1x1x32xf32> to vector<1x32xf32>
    %c49_198 = arith.constant 49 : index
    %c0_199 = arith.constant 0 : index
    %249 = vector.load %arg11[%c49_198, %c0_199] : memref<80x32xf32, #tpu.memory_space<vmem>>, vector<1x32xf32>
    tpu.vector_store %arg11[%c49_198, %c0_199], %248 {strides = array<i32>} : memref<80x32xf32, #tpu.memory_space<vmem>>, vector<1x32xf32>,
    %c50 = arith.constant 50 : index
    %250 = memref.load %arg1[%c50] : memref<80xi32, #tpu.memory_space<smem>>
    %251 = arith.index_cast %250 : i32 to index
    %c0_200 = arith.constant 0 : index
    %c0_201 = arith.constant 0 : index
    %252 = vector.load %arg3[%251, %c0_200, %c0_201] : memref<64x1x32xf32, #tpu.memory_space<vmem>>, vector<1x1x32xf32>
    %253 = vector.shape_cast %252 : vector<1x1x32xf32> to vector<1x32xf32>
    %c50_202 = arith.constant 50 : index
    %c0_203 = arith.constant 0 : index
    %254 = vector.load %arg11[%c50_202, %c0_203] : memref<80x32xf32, #tpu.memory_space<vmem>>, vector<1x32xf32>
    tpu.vector_store %arg11[%c50_202, %c0_203], %253 {strides = array<i32>} : memref<80x32xf32, #tpu.memory_space<vmem>>, vector<1x32xf32>,
    %c51 = arith.constant 51 : index
    %255 = memref.load %arg1[%c51] : memref<80xi32, #tpu.memory_space<smem>>
    %256 = arith.index_cast %255 : i32 to index
    %c0_204 = arith.constant 0 : index
    %c0_205 = arith.constant 0 : index
    %257 = vector.load %arg3[%256, %c0_204, %c0_205] : memref<64x1x32xf32, #tpu.memory_space<vmem>>, vector<1x1x32xf32>
    %258 = vector.shape_cast %257 : vector<1x1x32xf32> to vector<1x32xf32>
    %c51_206 = arith.constant 51 : index
    %c0_207 = arith.constant 0 : index
    %259 = vector.load %arg11[%c51_206, %c0_207] : memref<80x32xf32, #tpu.memory_space<vmem>>, vector<1x32xf32>
    tpu.vector_store %arg11[%c51_206, %c0_207], %258 {strides = array<i32>} : memref<80x32xf32, #tpu.memory_space<vmem>>, vector<1x32xf32>,
    %c52 = arith.constant 52 : index
    %260 = memref.load %arg1[%c52] : memref<80xi32, #tpu.memory_space<smem>>
    %261 = arith.index_cast %260 : i32 to index
    %c0_208 = arith.constant 0 : index
    %c0_209 = arith.constant 0 : index
    %262 = vector.load %arg3[%261, %c0_208, %c0_209] : memref<64x1x32xf32, #tpu.memory_space<vmem>>, vector<1x1x32xf32>
    %263 = vector.shape_cast %262 : vector<1x1x32xf32> to vector<1x32xf32>
    %c52_210 = arith.constant 52 : index
    %c0_211 = arith.constant 0 : index
    %264 = vector.load %arg11[%c52_210, %c0_211] : memref<80x32xf32, #tpu.memory_space<vmem>>, vector<1x32xf32>
    tpu.vector_store %arg11[%c52_210, %c0_211], %263 {strides = array<i32>} : memref<80x32xf32, #tpu.memory_space<vmem>>, vector<1x32xf32>,
    %c53 = arith.constant 53 : index
    %265 = memref.load %arg1[%c53] : memref<80xi32, #tpu.memory_space<smem>>
    %266 = arith.index_cast %265 : i32 to index
    %c0_212 = arith.constant 0 : index
    %c0_213 = arith.constant 0 : index
    %267 = vector.load %arg3[%266, %c0_212, %c0_213] : memref<64x1x32xf32, #tpu.memory_space<vmem>>, vector<1x1x32xf32>
    %268 = vector.shape_cast %267 : vector<1x1x32xf32> to vector<1x32xf32>
    %c53_214 = arith.constant 53 : index
    %c0_215 = arith.constant 0 : index
    %269 = vector.load %arg11[%c53_214, %c0_215] : memref<80x32xf32, #tpu.memory_space<vmem>>, vector<1x32xf32>
    tpu.vector_store %arg11[%c53_214, %c0_215], %268 {strides = array<i32>} : memref<80x32xf32, #tpu.memory_space<vmem>>, vector<1x32xf32>,
    %c54 = arith.constant 54 : index
    %270 = memref.load %arg1[%c54] : memref<80xi32, #tpu.memory_space<smem>>
    %271 = arith.index_cast %270 : i32 to index
    %c0_216 = arith.constant 0 : index
    %c0_217 = arith.constant 0 : index
    %272 = vector.load %arg3[%271, %c0_216, %c0_217] : memref<64x1x32xf32, #tpu.memory_space<vmem>>, vector<1x1x32xf32>
    %273 = vector.shape_cast %272 : vector<1x1x32xf32> to vector<1x32xf32>
    %c54_218 = arith.constant 54 : index
    %c0_219 = arith.constant 0 : index
    %274 = vector.load %arg11[%c54_218, %c0_219] : memref<80x32xf32, #tpu.memory_space<vmem>>, vector<1x32xf32>
    tpu.vector_store %arg11[%c54_218, %c0_219], %273 {strides = array<i32>} : memref<80x32xf32, #tpu.memory_space<vmem>>, vector<1x32xf32>,
    %c55 = arith.constant 55 : index
    %275 = memref.load %arg1[%c55] : memref<80xi32, #tpu.memory_space<smem>>
    %276 = arith.index_cast %275 : i32 to index
    %c0_220 = arith.constant 0 : index
    %c0_221 = arith.constant 0 : index
    %277 = vector.load %arg3[%276, %c0_220, %c0_221] : memref<64x1x32xf32, #tpu.memory_space<vmem>>, vector<1x1x32xf32>
    %278 = vector.shape_cast %277 : vector<1x1x32xf32> to vector<1x32xf32>
    %c55_222 = arith.constant 55 : index
    %c0_223 = arith.constant 0 : index
    %279 = vector.load %arg11[%c55_222, %c0_223] : memref<80x32xf32, #tpu.memory_space<vmem>>, vector<1x32xf32>
    tpu.vector_store %arg11[%c55_222, %c0_223], %278 {strides = array<i32>} : memref<80x32xf32, #tpu.memory_space<vmem>>, vector<1x32xf32>,
    %c56 = arith.constant 56 : index
    %280 = memref.load %arg1[%c56] : memref<80xi32, #tpu.memory_space<smem>>
    %281 = arith.index_cast %280 : i32 to index
    %c0_224 = arith.constant 0 : index
    %c0_225 = arith.constant 0 : index
    %282 = vector.load %arg3[%281, %c0_224, %c0_225] : memref<64x1x32xf32, #tpu.memory_space<vmem>>, vector<1x1x32xf32>
    %283 = vector.shape_cast %282 : vector<1x1x32xf32> to vector<1x32xf32>
    %c56_226 = arith.constant 56 : index
    %c0_227 = arith.constant 0 : index
    %284 = vector.load %arg11[%c56_226, %c0_227] : memref<80x32xf32, #tpu.memory_space<vmem>>, vector<1x32xf32>
    tpu.vector_store %arg11[%c56_226, %c0_227], %283 {strides = array<i32>} : memref<80x32xf32, #tpu.memory_space<vmem>>, vector<1x32xf32>,
    %c57 = arith.constant 57 : index
    %285 = memref.load %arg1[%c57] : memref<80xi32, #tpu.memory_space<smem>>
    %286 = arith.index_cast %285 : i32 to index
    %c0_228 = arith.constant 0 : index
    %c0_229 = arith.constant 0 : index
    %287 = vector.load %arg3[%286, %c0_228, %c0_229] : memref<64x1x32xf32, #tpu.memory_space<vmem>>, vector<1x1x32xf32>
    %288 = vector.shape_cast %287 : vector<1x1x32xf32> to vector<1x32xf32>
    %c57_230 = arith.constant 57 : index
    %c0_231 = arith.constant 0 : index
    %289 = vector.load %arg11[%c57_230, %c0_231] : memref<80x32xf32, #tpu.memory_space<vmem>>, vector<1x32xf32>
    tpu.vector_store %arg11[%c57_230, %c0_231], %288 {strides = array<i32>} : memref<80x32xf32, #tpu.memory_space<vmem>>, vector<1x32xf32>,
    %c58 = arith.constant 58 : index
    %290 = memref.load %arg1[%c58] : memref<80xi32, #tpu.memory_space<smem>>
    %291 = arith.index_cast %290 : i32 to index
    %c0_232 = arith.constant 0 : index
    %c0_233 = arith.constant 0 : index
    %292 = vector.load %arg3[%291, %c0_232, %c0_233] : memref<64x1x32xf32, #tpu.memory_space<vmem>>, vector<1x1x32xf32>
    %293 = vector.shape_cast %292 : vector<1x1x32xf32> to vector<1x32xf32>
    %c58_234 = arith.constant 58 : index
    %c0_235 = arith.constant 0 : index
    %294 = vector.load %arg11[%c58_234, %c0_235] : memref<80x32xf32, #tpu.memory_space<vmem>>, vector<1x32xf32>
    tpu.vector_store %arg11[%c58_234, %c0_235], %293 {strides = array<i32>} : memref<80x32xf32, #tpu.memory_space<vmem>>, vector<1x32xf32>,
    %c59 = arith.constant 59 : index
    %295 = memref.load %arg1[%c59] : memref<80xi32, #tpu.memory_space<smem>>
    %296 = arith.index_cast %295 : i32 to index
    %c0_236 = arith.constant 0 : index
    %c0_237 = arith.constant 0 : index
    %297 = vector.load %arg3[%296, %c0_236, %c0_237] : memref<64x1x32xf32, #tpu.memory_space<vmem>>, vector<1x1x32xf32>
    %298 = vector.shape_cast %297 : vector<1x1x32xf32> to vector<1x32xf32>
    %c59_238 = arith.constant 59 : index
    %c0_239 = arith.constant 0 : index
    %299 = vector.load %arg11[%c59_238, %c0_239] : memref<80x32xf32, #tpu.memory_space<vmem>>, vector<1x32xf32>
    tpu.vector_store %arg11[%c59_238, %c0_239], %298 {strides = array<i32>} : memref<80x32xf32, #tpu.memory_space<vmem>>, vector<1x32xf32>,
    %c60 = arith.constant 60 : index
    %300 = memref.load %arg1[%c60] : memref<80xi32, #tpu.memory_space<smem>>
    %301 = arith.index_cast %300 : i32 to index
    %c0_240 = arith.constant 0 : index
    %c0_241 = arith.constant 0 : index
    %302 = vector.load %arg3[%301, %c0_240, %c0_241] : memref<64x1x32xf32, #tpu.memory_space<vmem>>, vector<1x1x32xf32>
    %303 = vector.shape_cast %302 : vector<1x1x32xf32> to vector<1x32xf32>
    %c60_242 = arith.constant 60 : index
    %c0_243 = arith.constant 0 : index
    %304 = vector.load %arg11[%c60_242, %c0_243] : memref<80x32xf32, #tpu.memory_space<vmem>>, vector<1x32xf32>
    tpu.vector_store %arg11[%c60_242, %c0_243], %303 {strides = array<i32>} : memref<80x32xf32, #tpu.memory_space<vmem>>, vector<1x32xf32>,
    %c61 = arith.constant 61 : index
    %305 = memref.load %arg1[%c61] : memref<80xi32, #tpu.memory_space<smem>>
    %306 = arith.index_cast %305 : i32 to index
    %c0_244 = arith.constant 0 : index
    %c0_245 = arith.constant 0 : index
    %307 = vector.load %arg3[%306, %c0_244, %c0_245] : memref<64x1x32xf32, #tpu.memory_space<vmem>>, vector<1x1x32xf32>
    %308 = vector.shape_cast %307 : vector<1x1x32xf32> to vector<1x32xf32>
    %c61_246 = arith.constant 61 : index
    %c0_247 = arith.constant 0 : index
    %309 = vector.load %arg11[%c61_246, %c0_247] : memref<80x32xf32, #tpu.memory_space<vmem>>, vector<1x32xf32>
    tpu.vector_store %arg11[%c61_246, %c0_247], %308 {strides = array<i32>} : memref<80x32xf32, #tpu.memory_space<vmem>>, vector<1x32xf32>,
    %c62 = arith.constant 62 : index
    %310 = memref.load %arg1[%c62] : memref<80xi32, #tpu.memory_space<smem>>
    %311 = arith.index_cast %310 : i32 to index
    %c0_248 = arith.constant 0 : index
    %c0_249 = arith.constant 0 : index
    %312 = vector.load %arg3[%311, %c0_248, %c0_249] : memref<64x1x32xf32, #tpu.memory_space<vmem>>, vector<1x1x32xf32>
    %313 = vector.shape_cast %312 : vector<1x1x32xf32> to vector<1x32xf32>
    %c62_250 = arith.constant 62 : index
    %c0_251 = arith.constant 0 : index
    %314 = vector.load %arg11[%c62_250, %c0_251] : memref<80x32xf32, #tpu.memory_space<vmem>>, vector<1x32xf32>
    tpu.vector_store %arg11[%c62_250, %c0_251], %313 {strides = array<i32>} : memref<80x32xf32, #tpu.memory_space<vmem>>, vector<1x32xf32>,
    %c63 = arith.constant 63 : index
    %315 = memref.load %arg1[%c63] : memref<80xi32, #tpu.memory_space<smem>>
    %316 = arith.index_cast %315 : i32 to index
    %c0_252 = arith.constant 0 : index
    %c0_253 = arith.constant 0 : index
    %317 = vector.load %arg3[%316, %c0_252, %c0_253] : memref<64x1x32xf32, #tpu.memory_space<vmem>>, vector<1x1x32xf32>
    %318 = vector.shape_cast %317 : vector<1x1x32xf32> to vector<1x32xf32>
    %c63_254 = arith.constant 63 : index
    %c0_255 = arith.constant 0 : index
    %319 = vector.load %arg11[%c63_254, %c0_255] : memref<80x32xf32, #tpu.memory_space<vmem>>, vector<1x32xf32>
    tpu.vector_store %arg11[%c63_254, %c0_255], %318 {strides = array<i32>} : memref<80x32xf32, #tpu.memory_space<vmem>>, vector<1x32xf32>,
    %c64 = arith.constant 64 : index
    %320 = memref.load %arg1[%c64] : memref<80xi32, #tpu.memory_space<smem>>
    %321 = arith.index_cast %320 : i32 to index
    %c0_256 = arith.constant 0 : index
    %c0_257 = arith.constant 0 : index
    %322 = vector.load %arg3[%321, %c0_256, %c0_257] : memref<64x1x32xf32, #tpu.memory_space<vmem>>, vector<1x1x32xf32>
    %323 = vector.shape_cast %322 : vector<1x1x32xf32> to vector<1x32xf32>
    %c64_258 = arith.constant 64 : index
    %c0_259 = arith.constant 0 : index
    %324 = vector.load %arg11[%c64_258, %c0_259] : memref<80x32xf32, #tpu.memory_space<vmem>>, vector<1x32xf32>
    tpu.vector_store %arg11[%c64_258, %c0_259], %323 {strides = array<i32>} : memref<80x32xf32, #tpu.memory_space<vmem>>, vector<1x32xf32>,
    %c65 = arith.constant 65 : index
    %325 = memref.load %arg1[%c65] : memref<80xi32, #tpu.memory_space<smem>>
    %326 = arith.index_cast %325 : i32 to index
    %c0_260 = arith.constant 0 : index
    %c0_261 = arith.constant 0 : index
    %327 = vector.load %arg3[%326, %c0_260, %c0_261] : memref<64x1x32xf32, #tpu.memory_space<vmem>>, vector<1x1x32xf32>
    %328 = vector.shape_cast %327 : vector<1x1x32xf32> to vector<1x32xf32>
    %c65_262 = arith.constant 65 : index
    %c0_263 = arith.constant 0 : index
    %329 = vector.load %arg11[%c65_262, %c0_263] : memref<80x32xf32, #tpu.memory_space<vmem>>, vector<1x32xf32>
    tpu.vector_store %arg11[%c65_262, %c0_263], %328 {strides = array<i32>} : memref<80x32xf32, #tpu.memory_space<vmem>>, vector<1x32xf32>,
    %c66 = arith.constant 66 : index
    %330 = memref.load %arg1[%c66] : memref<80xi32, #tpu.memory_space<smem>>
    %331 = arith.index_cast %330 : i32 to index
    %c0_264 = arith.constant 0 : index
    %c0_265 = arith.constant 0 : index
    %332 = vector.load %arg3[%331, %c0_264, %c0_265] : memref<64x1x32xf32, #tpu.memory_space<vmem>>, vector<1x1x32xf32>
    %333 = vector.shape_cast %332 : vector<1x1x32xf32> to vector<1x32xf32>
    %c66_266 = arith.constant 66 : index
    %c0_267 = arith.constant 0 : index
    %334 = vector.load %arg11[%c66_266, %c0_267] : memref<80x32xf32, #tpu.memory_space<vmem>>, vector<1x32xf32>
    tpu.vector_store %arg11[%c66_266, %c0_267], %333 {strides = array<i32>} : memref<80x32xf32, #tpu.memory_space<vmem>>, vector<1x32xf32>,
    %c67 = arith.constant 67 : index
    %335 = memref.load %arg1[%c67] : memref<80xi32, #tpu.memory_space<smem>>
    %336 = arith.index_cast %335 : i32 to index
    %c0_268 = arith.constant 0 : index
    %c0_269 = arith.constant 0 : index
    %337 = vector.load %arg3[%336, %c0_268, %c0_269] : memref<64x1x32xf32, #tpu.memory_space<vmem>>, vector<1x1x32xf32>
    %338 = vector.shape_cast %337 : vector<1x1x32xf32> to vector<1x32xf32>
    %c67_270 = arith.constant 67 : index
    %c0_271 = arith.constant 0 : index
    %339 = vector.load %arg11[%c67_270, %c0_271] : memref<80x32xf32, #tpu.memory_space<vmem>>, vector<1x32xf32>
    tpu.vector_store %arg11[%c67_270, %c0_271], %338 {strides = array<i32>} : memref<80x32xf32, #tpu.memory_space<vmem>>, vector<1x32xf32>,
    %c68 = arith.constant 68 : index
    %340 = memref.load %arg1[%c68] : memref<80xi32, #tpu.memory_space<smem>>
    %341 = arith.index_cast %340 : i32 to index
    %c0_272 = arith.constant 0 : index
    %c0_273 = arith.constant 0 : index
    %342 = vector.load %arg3[%341, %c0_272, %c0_273] : memref<64x1x32xf32, #tpu.memory_space<vmem>>, vector<1x1x32xf32>
    %343 = vector.shape_cast %342 : vector<1x1x32xf32> to vector<1x32xf32>
    %c68_274 = arith.constant 68 : index
    %c0_275 = arith.constant 0 : index
    %344 = vector.load %arg11[%c68_274, %c0_275] : memref<80x32xf32, #tpu.memory_space<vmem>>, vector<1x32xf32>
    tpu.vector_store %arg11[%c68_274, %c0_275], %343 {strides = array<i32>} : memref<80x32xf32, #tpu.memory_space<vmem>>, vector<1x32xf32>,
    %c69 = arith.constant 69 : index
    %345 = memref.load %arg1[%c69] : memref<80xi32, #tpu.memory_space<smem>>
    %346 = arith.index_cast %345 : i32 to index
    %c0_276 = arith.constant 0 : index
    %c0_277 = arith.constant 0 : index
    %347 = vector.load %arg3[%346, %c0_276, %c0_277] : memref<64x1x32xf32, #tpu.memory_space<vmem>>, vector<1x1x32xf32>
    %348 = vector.shape_cast %347 : vector<1x1x32xf32> to vector<1x32xf32>
    %c69_278 = arith.constant 69 : index
    %c0_279 = arith.constant 0 : index
    %349 = vector.load %arg11[%c69_278, %c0_279] : memref<80x32xf32, #tpu.memory_space<vmem>>, vector<1x32xf32>
    tpu.vector_store %arg11[%c69_278, %c0_279], %348 {strides = array<i32>} : memref<80x32xf32, #tpu.memory_space<vmem>>, vector<1x32xf32>,
    %c70 = arith.constant 70 : index
    %350 = memref.load %arg1[%c70] : memref<80xi32, #tpu.memory_space<smem>>
    %351 = arith.index_cast %350 : i32 to index
    %c0_280 = arith.constant 0 : index
    %c0_281 = arith.constant 0 : index
    %352 = vector.load %arg3[%351, %c0_280, %c0_281] : memref<64x1x32xf32, #tpu.memory_space<vmem>>, vector<1x1x32xf32>
    %353 = vector.shape_cast %352 : vector<1x1x32xf32> to vector<1x32xf32>
    %c70_282 = arith.constant 70 : index
    %c0_283 = arith.constant 0 : index
    %354 = vector.load %arg11[%c70_282, %c0_283] : memref<80x32xf32, #tpu.memory_space<vmem>>, vector<1x32xf32>
    tpu.vector_store %arg11[%c70_282, %c0_283], %353 {strides = array<i32>} : memref<80x32xf32, #tpu.memory_space<vmem>>, vector<1x32xf32>,
    %c71 = arith.constant 71 : index
    %355 = memref.load %arg1[%c71] : memref<80xi32, #tpu.memory_space<smem>>
    %356 = arith.index_cast %355 : i32 to index
    %c0_284 = arith.constant 0 : index
    %c0_285 = arith.constant 0 : index
    %357 = vector.load %arg3[%356, %c0_284, %c0_285] : memref<64x1x32xf32, #tpu.memory_space<vmem>>, vector<1x1x32xf32>
    %358 = vector.shape_cast %357 : vector<1x1x32xf32> to vector<1x32xf32>
    %c71_286 = arith.constant 71 : index
    %c0_287 = arith.constant 0 : index
    %359 = vector.load %arg11[%c71_286, %c0_287] : memref<80x32xf32, #tpu.memory_space<vmem>>, vector<1x32xf32>
    tpu.vector_store %arg11[%c71_286, %c0_287], %358 {strides = array<i32>} : memref<80x32xf32, #tpu.memory_space<vmem>>, vector<1x32xf32>,
    %c72 = arith.constant 72 : index
    %360 = memref.load %arg1[%c72] : memref<80xi32, #tpu.memory_space<smem>>
    %361 = arith.index_cast %360 : i32 to index
    %c0_288 = arith.constant 0 : index
    %c0_289 = arith.constant 0 : index
    %362 = vector.load %arg3[%361, %c0_288, %c0_289] : memref<64x1x32xf32, #tpu.memory_space<vmem>>, vector<1x1x32xf32>
    %363 = vector.shape_cast %362 : vector<1x1x32xf32> to vector<1x32xf32>
    %c72_290 = arith.constant 72 : index
    %c0_291 = arith.constant 0 : index
    %364 = vector.load %arg11[%c72_290, %c0_291] : memref<80x32xf32, #tpu.memory_space<vmem>>, vector<1x32xf32>
    tpu.vector_store %arg11[%c72_290, %c0_291], %363 {strides = array<i32>} : memref<80x32xf32, #tpu.memory_space<vmem>>, vector<1x32xf32>,
    %c73 = arith.constant 73 : index
    %365 = memref.load %arg1[%c73] : memref<80xi32, #tpu.memory_space<smem>>
    %366 = arith.index_cast %365 : i32 to index
    %c0_292 = arith.constant 0 : index
    %c0_293 = arith.constant 0 : index
    %367 = vector.load %arg3[%366, %c0_292, %c0_293] : memref<64x1x32xf32, #tpu.memory_space<vmem>>, vector<1x1x32xf32>
    %368 = vector.shape_cast %367 : vector<1x1x32xf32> to vector<1x32xf32>
    %c73_294 = arith.constant 73 : index
    %c0_295 = arith.constant 0 : index
    %369 = vector.load %arg11[%c73_294, %c0_295] : memref<80x32xf32, #tpu.memory_space<vmem>>, vector<1x32xf32>
    tpu.vector_store %arg11[%c73_294, %c0_295], %368 {strides = array<i32>} : memref<80x32xf32, #tpu.memory_space<vmem>>, vector<1x32xf32>,
    %c74 = arith.constant 74 : index
    %370 = memref.load %arg1[%c74] : memref<80xi32, #tpu.memory_space<smem>>
    %371 = arith.index_cast %370 : i32 to index
    %c0_296 = arith.constant 0 : index
    %c0_297 = arith.constant 0 : index
    %372 = vector.load %arg3[%371, %c0_296, %c0_297] : memref<64x1x32xf32, #tpu.memory_space<vmem>>, vector<1x1x32xf32>
    %373 = vector.shape_cast %372 : vector<1x1x32xf32> to vector<1x32xf32>
    %c74_298 = arith.constant 74 : index
    %c0_299 = arith.constant 0 : index
    %374 = vector.load %arg11[%c74_298, %c0_299] : memref<80x32xf32, #tpu.memory_space<vmem>>, vector<1x32xf32>
    tpu.vector_store %arg11[%c74_298, %c0_299], %373 {strides = array<i32>} : memref<80x32xf32, #tpu.memory_space<vmem>>, vector<1x32xf32>,
    %c75 = arith.constant 75 : index
    %375 = memref.load %arg1[%c75] : memref<80xi32, #tpu.memory_space<smem>>
    %376 = arith.index_cast %375 : i32 to index
    %c0_300 = arith.constant 0 : index
    %c0_301 = arith.constant 0 : index
    %377 = vector.load %arg3[%376, %c0_300, %c0_301] : memref<64x1x32xf32, #tpu.memory_space<vmem>>, vector<1x1x32xf32>
    %378 = vector.shape_cast %377 : vector<1x1x32xf32> to vector<1x32xf32>
    %c75_302 = arith.constant 75 : index
    %c0_303 = arith.constant 0 : index
    %379 = vector.load %arg11[%c75_302, %c0_303] : memref<80x32xf32, #tpu.memory_space<vmem>>, vector<1x32xf32>
    tpu.vector_store %arg11[%c75_302, %c0_303], %378 {strides = array<i32>} : memref<80x32xf32, #tpu.memory_space<vmem>>, vector<1x32xf32>,
    %c76 = arith.constant 76 : index
    %380 = memref.load %arg1[%c76] : memref<80xi32, #tpu.memory_space<smem>>
    %381 = arith.index_cast %380 : i32 to index
    %c0_304 = arith.constant 0 : index
    %c0_305 = arith.constant 0 : index
    %382 = vector.load %arg3[%381, %c0_304, %c0_305] : memref<64x1x32xf32, #tpu.memory_space<vmem>>, vector<1x1x32xf32>
    %383 = vector.shape_cast %382 : vector<1x1x32xf32> to vector<1x32xf32>
    %c76_306 = arith.constant 76 : index
    %c0_307 = arith.constant 0 : index
    %384 = vector.load %arg11[%c76_306, %c0_307] : memref<80x32xf32, #tpu.memory_space<vmem>>, vector<1x32xf32>
    tpu.vector_store %arg11[%c76_306, %c0_307], %383 {strides = array<i32>} : memref<80x32xf32, #tpu.memory_space<vmem>>, vector<1x32xf32>,
    %c77 = arith.constant 77 : index
    %385 = memref.load %arg1[%c77] : memref<80xi32, #tpu.memory_space<smem>>
    %386 = arith.index_cast %385 : i32 to index
    %c0_308 = arith.constant 0 : index
    %c0_309 = arith.constant 0 : index
    %387 = vector.load %arg3[%386, %c0_308, %c0_309] : memref<64x1x32xf32, #tpu.memory_space<vmem>>, vector<1x1x32xf32>
    %388 = vector.shape_cast %387 : vector<1x1x32xf32> to vector<1x32xf32>
    %c77_310 = arith.constant 77 : index
    %c0_311 = arith.constant 0 : index
    %389 = vector.load %arg11[%c77_310, %c0_311] : memref<80x32xf32, #tpu.memory_space<vmem>>, vector<1x32xf32>
    tpu.vector_store %arg11[%c77_310, %c0_311], %388 {strides = array<i32>} : memref<80x32xf32, #tpu.memory_space<vmem>>, vector<1x32xf32>,
    %c78 = arith.constant 78 : index
    %390 = memref.load %arg1[%c78] : memref<80xi32, #tpu.memory_space<smem>>
    %391 = arith.index_cast %390 : i32 to index
    %c0_312 = arith.constant 0 : index
    %c0_313 = arith.constant 0 : index
    %392 = vector.load %arg3[%391, %c0_312, %c0_313] : memref<64x1x32xf32, #tpu.memory_space<vmem>>, vector<1x1x32xf32>
    %393 = vector.shape_cast %392 : vector<1x1x32xf32> to vector<1x32xf32>
    %c78_314 = arith.constant 78 : index
    %c0_315 = arith.constant 0 : index
    %394 = vector.load %arg11[%c78_314, %c0_315] : memref<80x32xf32, #tpu.memory_space<vmem>>, vector<1x32xf32>
    tpu.vector_store %arg11[%c78_314, %c0_315], %393 {strides = array<i32>} : memref<80x32xf32, #tpu.memory_space<vmem>>, vector<1x32xf32>,
    %c79 = arith.constant 79 : index
    %395 = memref.load %arg1[%c79] : memref<80xi32, #tpu.memory_space<smem>>
    %396 = arith.index_cast %395 : i32 to index
    %c0_316 = arith.constant 0 : index
    %c0_317 = arith.constant 0 : index
    %397 = vector.load %arg3[%396, %c0_316, %c0_317] : memref<64x1x32xf32, #tpu.memory_space<vmem>>, vector<1x1x32xf32>
    %398 = vector.shape_cast %397 : vector<1x1x32xf32> to vector<1x32xf32>
    %c79_318 = arith.constant 79 : index
    %c0_319 = arith.constant 0 : index
    %399 = vector.load %arg11[%c79_318, %c0_319] : memref<80x32xf32, #tpu.memory_space<vmem>>, vector<1x32xf32>
    tpu.vector_store %arg11[%c79_318, %c0_319], %398 {strides = array<i32>} : memref<80x32xf32, #tpu.memory_space<vmem>>, vector<1x32xf32>,
    %c0_320 = arith.constant 0 : index
    %c0_321 = arith.constant 0 : index
    %400 = vector.load %arg11[%c0_320, %c0_321] : memref<80x32xf32, #tpu.memory_space<vmem>>, vector<80x32xf32>
    %c0_322 = arith.constant 0 : index
    %c0_323 = arith.constant 0 : index
    %401 = vector.load %arg4[%c0_322, %c0_323] : memref<32x128xf32, #tpu.memory_space<vmem>>, vector<32x128xf32>
    %cst = arith.constant dense<0.000000e+00> : vector<80x128xf32>
    %402 = tpu.matmul %400, %401, %cst {dimension_numbers = #tpu.dot_dimension_numbers<[1], [0], [0], [1], [0, 0, 1, 1], [], []>} : vector<80x32xf32>, vector<32x128xf32>, vector<80x128xf32> -> vector<80x128xf32>
    %c0_324 = arith.constant 0 : index
    %c0_325 = arith.constant 0 : index
    %403 = vector.load %arg6[%c0_324, %c0_325] : memref<1x128xf32, #tpu.memory_space<vmem>>, vector<1x128xf32>
    %404 = vector.broadcast %403 : vector<1x128xf32> to vector<80x128xf32>
    %405 = arith.addf %402, %404 : vector<80x128xf32>
    %c0_326 = arith.constant 0 : index
    %c0_327 = arith.constant 0 : index
    %406 = vector.load %arg12[%c0_326, %c0_327] : memref<80x128xf32, #tpu.memory_space<vmem>>, vector<80x128xf32>
    tpu.vector_store %arg12[%c0_326, %c0_327], %405 {strides = array<i32>} : memref<80x128xf32, #tpu.memory_space<vmem>>, vector<80x128xf32>,
    %c0_328 = arith.constant 0 : index
    %c0_329 = arith.constant 0 : index
    %407 = vector.load %arg5[%c0_328, %c0_329] : memref<32x128xf32, #tpu.memory_space<vmem>>, vector<32x128xf32>
    %c0_330 = arith.constant 0 : index
    %c0_331 = arith.constant 0 : index
    %408 = vector.load %arg9[%c0_330, %c0_331] : memref<8x1xi32, #tpu.memory_space<vmem>>, vector<8x1xi32>
    %c0_332 = arith.constant 0 : index
    %409 = memref.load %arg2[%c0_332] : memref<1xi32, #tpu.memory_space<smem>>
    %c0_333 = arith.constant 0 : index
    %c0_334 = arith.constant 0 : index
    %410 = vector.load %arg7[%c0_333, %c0_334] : memref<8x32xf32, #tpu.memory_space<vmem>>, vector<8x32xf32>
    %c0_335 = arith.constant 0 : index
    %c0_336 = arith.constant 0 : index
    %411 = vector.load %arg8[%c0_335, %c0_336] : memref<8x32xf32, #tpu.memory_space<vmem>>, vector<8x32xf32>
    %cst_337 = arith.constant 0.000000e+00 : f32
    %412 = vector.broadcast %cst_337 : f32 to vector<8x32xf32>
    %c0_i32 = arith.constant 0 : i32
    %413 = arith.subi %409, %c0_i32 : i32
    %414 = arith.addi %c0_i32, %413 : i32
    %c1_i32 = arith.constant 1 : i32
    %415:3 = scf.for %arg13 = %c0_i32 to %414 step %c1_i32 iter_args(%arg14 = %410, %arg15 = %411, %arg16 = %412) -> (vector<8x32xf32>, vector<8x32xf32>, vector<8x32xf32>)  : i32 {
      %c8_i32 = arith.constant 8 : i32
      %421 = arith.muli %arg13, %c8_i32 : i32
      %422 = tpu.assume_multiple %421, 8 : i32
      %423 = arith.index_cast %422 : i32 to index
      %c0_341 = arith.constant 0 : index
      %424 = vector.load %arg12[%423, %c0_341] : memref<80x128xf32, #tpu.memory_space<vmem>>, vector<8x128xf32>
      %cst_342 = arith.constant dense<0.000000e+00> : vector<8x128xf32>
      %425 = tpu.matmul %arg14, %407, %cst_342 {dimension_numbers = #tpu.dot_dimension_numbers<[1], [0], [0], [1], [0, 0, 1, 1], [], []>} : vector<8x32xf32>, vector<32x128xf32>, vector<8x128xf32> -> vector<8x128xf32>
      %426 = arith.addf %424, %425 : vector<8x128xf32>
      %427 = vector.extract_strided_slice %426 {offsets = [0, 0], sizes = [8, 96], strides = [1, 1]} : vector<8x128xf32> to vector<8x96xf32>
      %428 = arith.negf %427 : vector<8x96xf32>
      %429 = math.exp %428 : vector<8x96xf32>
      %cst_343 = arith.constant 1.000000e+00 : f32
      %430 = vector.broadcast %cst_343 : f32 to vector<8x96xf32>
      %431 = arith.addf %430, %429 : vector<8x96xf32>
      %432 = arith.divf %430, %431 : vector<8x96xf32>
      %433 = vector.extract_strided_slice %426 {offsets = [0, 96], sizes = [8, 32], strides = [1, 1]} : vector<8x128xf32> to vector<8x32xf32>
      %434 = math.tanh %433 : vector<8x32xf32>
      %435 = vector.extract_strided_slice %432 {offsets = [0, 0], sizes = [8, 32], strides = [1, 1]} : vector<8x96xf32> to vector<8x32xf32>
      %436 = vector.extract_strided_slice %432 {offsets = [0, 32], sizes = [8, 32], strides = [1, 1]} : vector<8x96xf32> to vector<8x32xf32>
      %437 = vector.extract_strided_slice %432 {offsets = [0, 64], sizes = [8, 32], strides = [1, 1]} : vector<8x96xf32> to vector<8x32xf32>
      %438 = arith.mulf %436, %arg15 : vector<8x32xf32>
      %439 = arith.mulf %435, %434 : vector<8x32xf32>
      %440 = arith.addf %438, %439 : vector<8x32xf32>
      %441 = math.tanh %440 : vector<8x32xf32>
      %442 = arith.mulf %437, %441 : vector<8x32xf32>
      %443 = vector.broadcast %arg13 : i32 to vector<8x1xi32>
      %444 = arith.cmpi slt, %443, %408 : vector<8x1xi32>
      %445 = vector.shape_cast %444 : vector<8x1xi1> to vector<8x1xi1>
      %446 = vector.broadcast %445 : vector<8x1xi1> to vector<8x32xi1>
      %447 = arith.select %446, %440, %arg15 : vector<8x32xi1>, vector<8x32xf32>
      %448 = vector.shape_cast %444 : vector<8x1xi1> to vector<8x1xi1>
      %449 = vector.broadcast %448 : vector<8x1xi1> to vector<8x32xi1>
      %450 = arith.select %449, %442, %arg14 : vector<8x32xi1>, vector<8x32xf32>
      %cst_344 = arith.constant 0.000000e+00 : f32
      %451 = vector.shape_cast %444 : vector<8x1xi1> to vector<8x1xi1>
      %452 = vector.broadcast %451 : vector<8x1xi1> to vector<8x32xi1>
      %453 = vector.broadcast %cst_344 : f32 to vector<8x32xf32>
      %454 = arith.select %452, %442, %453 : vector<8x32xi1>, vector<8x32xf32>
      %455 = arith.addf %arg16, %454 : vector<8x32xf32>
      scf.yield %450, %447, %455 : vector<8x32xf32>, vector<8x32xf32>, vector<8x32xf32>
    }
    %416 = arith.sitofp %409 : i32 to f32
    %cst_338 = arith.constant 1.000000e+00 : f32
    %417 = arith.divf %cst_338, %416 : f32
    %418 = vector.broadcast %417 : f32 to vector<8x32xf32>
    %419 = arith.mulf %415#2, %418 : vector<8x32xf32>
    %c0_339 = arith.constant 0 : index
    %c0_340 = arith.constant 0 : index
    %420 = vector.load %arg10[%c0_339, %c0_340] : memref<8x32xf32, #tpu.memory_space<vmem>>, vector<8x32xf32>
    tpu.vector_store %arg10[%c0_339, %c0_340], %419 {strides = array<i32>} : memref<8x32xf32, #tpu.memory_space<vmem>>, vector<8x32xf32>,
    return
  }
  func.func @transform_0(%arg0: i32, %arg1: memref<80xi32, #tpu.memory_space<smem>>, %arg2: memref<1xi32, #tpu.memory_space<smem>>) -> (i32, i32, i32) {
    %c0_i32 = arith.constant 0 : i32
    %c0_i32_0 = arith.constant 0 : i32
    %c0_i32_1 = arith.constant 0 : i32
    %c0_i32_2 = arith.constant 0 : i32
    return %c0_i32, %c0_i32_0, %c0_i32_1 : i32, i32, i32
  }
  func.func @transform_1(%arg0: i32, %arg1: memref<80xi32, #tpu.memory_space<smem>>, %arg2: memref<1xi32, #tpu.memory_space<smem>>) -> (i32, i32) {
    %c0_i32 = arith.constant 0 : i32
    %c0_i32_0 = arith.constant 0 : i32
    %c0_i32_1 = arith.constant 0 : i32
    return %c0_i32, %c0_i32_0 : i32, i32
  }
  func.func @transform_2(%arg0: i32, %arg1: memref<80xi32, #tpu.memory_space<smem>>, %arg2: memref<1xi32, #tpu.memory_space<smem>>) -> (i32, i32) {
    %c0_i32 = arith.constant 0 : i32
    %c0_i32_0 = arith.constant 0 : i32
    %c0_i32_1 = arith.constant 0 : i32
    return %c0_i32, %c0_i32_0 : i32, i32
  }
  func.func @transform_3(%arg0: i32, %arg1: memref<80xi32, #tpu.memory_space<smem>>, %arg2: memref<1xi32, #tpu.memory_space<smem>>) -> (i32, i32) {
    %c0_i32 = arith.constant 0 : i32
    %c0_i32_0 = arith.constant 0 : i32
    %c0_i32_1 = arith.constant 0 : i32
    return %c0_i32, %c0_i32_0 : i32, i32
  }
  func.func @transform_4(%arg0: i32, %arg1: memref<80xi32, #tpu.memory_space<smem>>, %arg2: memref<1xi32, #tpu.memory_space<smem>>) -> (i32, i32) {
    %c0_i32 = arith.constant 0 : i32
    %c0_i32_0 = arith.constant 0 : i32
    %c0_i32_1 = arith.constant 0 : i32
    return %c0_i32, %c0_i32_0 : i32, i32
  }
  func.func @transform_5(%arg0: i32, %arg1: memref<80xi32, #tpu.memory_space<smem>>, %arg2: memref<1xi32, #tpu.memory_space<smem>>) -> (i32, i32) {
    %c0_i32 = arith.constant 0 : i32
    %c0_i32_0 = arith.constant 0 : i32
    %c0_i32_1 = arith.constant 0 : i32
    return %c0_i32, %c0_i32_0 : i32, i32
  }
  func.func @transform_6(%arg0: i32, %arg1: memref<80xi32, #tpu.memory_space<smem>>, %arg2: memref<1xi32, #tpu.memory_space<smem>>) -> (i32, i32) {
    %c0_i32 = arith.constant 0 : i32
    %c0_i32_0 = arith.constant 0 : i32
    %c0_i32_1 = arith.constant 0 : i32
    return %c0_i32, %c0_i32_0 : i32, i32
  }
  func.func @transform_7(%arg0: i32, %arg1: memref<80xi32, #tpu.memory_space<smem>>, %arg2: memref<1xi32, #tpu.memory_space<smem>>) -> (i32, i32) {
    %c0_i32 = arith.constant 0 : i32
    %c0_i32_0 = arith.constant 0 : i32
    %c0_i32_1 = arith.constant 0 : i32
    return %c0_i32, %c0_i32_0 : i32, i32
  }
}

</mosaic_0001>

<llo_original>
// kernel: tpu_custom_call.1
$region0: #{tpu_custom_call.1}
  #allocation0 [shape = 'u32[]', space=smem, size = 0x4, offset = 0x4, fixed_abs, tag = 'smem constant byte address 0x4 - core index']
  #allocation1 [shape = 'u32[72,128]{1,0:T(1,128)}', space=vmem, size = 0x9000, scoped, tag = 'internal scratch']
  #allocation2 [shape = 'f32[80,32]{1,0:T(8,128)}', space=vmem, size = 0xa000, scoped, tag = 'scratch operand']
  #allocation3 [shape = 'f32[80,128]{1,0:T(8,128)}', space=vmem, size = 0xa000, scoped, tag = 'scratch operand']
  #allocation4 [shape = 's32[1]{0}', space=sflag, size = 0x4, scoped, tag = 'scoped memory for tpu_custom_call.1']
  #allocation5 [shape = 'u8[512]{0}', space=smem, size = 0x200, scoped, tag = 'prefetched SMEM operand 0']
  #allocation6 [shape = 's32[1]{0:T(128)S(6)}', space=smem, size = 0x200, scoped, tag = 'prefetched SMEM operand 1']
  %s0 = inlined_call_operand.vmem [shape: s32[80], index: 0, kind: input, shape index: {}]
  %s1 = inlined_call_operand.<no memory space> [shape: s32[1], index: 1, kind: input, shape index: {}]
  %s2 = inlined_call_operand.vmem [shape: f32[64,1,32], index: 2, kind: input, shape index: {}]
  %s3 = inlined_call_operand.vmem [shape: f32[32,128], index: 3, kind: input, shape index: {}]
  %s4 = inlined_call_operand.vmem [shape: f32[32,128], index: 4, kind: input, shape index: {}]
  %s5 = inlined_call_operand.vmem [shape: f32[1,128], index: 5, kind: input, shape index: {}]
  %s6 = inlined_call_operand.vmem [shape: f32[8,32], index: 6, kind: input, shape index: {}]
  %s7 = inlined_call_operand.vmem [shape: f32[8,32], index: 7, kind: input, shape index: {}]
  %s8 = inlined_call_operand.vmem [shape: s32[8,1], index: 8, kind: input, shape index: {}]
  %s9 = inlined_call_operand.hbm [shape: f32[8,32], index: 9, kind: output, shape index: {}]
  %s10 = sld [smem:[#allocation0]]
  $region45: #{tpu_custom_call.1} parent=0
    _
  %s12 = ssub.s32 1, %s10
  %s13 = scalar_select 0, %s12, %s10
  %s15 = sshll.u32 %s0, 4
  %s16 = int_to_ptr.vmem [resolvable:$true] %s15
  %18 = dma.vmem_to_smem %s16, 16, [#allocation5], [#allocation4]
  %19 = sst [smem:[#allocation6]] %s1
  %21 = dma.done [#allocation4], 16
  %22 = sfence
  $region1: #{tpu_custom_call.1} parent=0
    #allocation7 [shape = 'u8[4096]{0}', space=vmem, size = 0x1000, scoped, tag = 'output window, operand 0, single buffered']
    #allocation8 [shape = 's32[1]{0}', space=sflag, size = 0x4, scoped, tag = 'scoped memory for tpu_custom_call.1']
    %23 = vsyncpa [#allocation8], 0
    // Predicated region
    $region2: #{tpu_custom_call.1} parent=1 // pred_check
      _
    $region3: #{tpu_custom_call.1} parent=1 // pred_check_branch
      %25 = sbr.rel (0) target = $region5
    $region4: #{tpu_custom_call.1} parent=1 // pred_region
      _
    $region5: #{tpu_custom_call.1} parent=1 // pred_fallthru
      _
    // Predicated region
    $region6: #{tpu_custom_call.1} parent=1 // pred_check
      _
    $region7: #{tpu_custom_call.1} parent=1 // pred_check_branch
      %27 = sbr.rel (0) target = $region9
    $region8: #{tpu_custom_call.1} parent=1 // pred_region
      _
    $region9: #{tpu_custom_call.1} parent=1 // pred_fallthru
      _
    // Predicated region
    $region10: #{tpu_custom_call.1} parent=1 // pred_check
      _
    $region11: #{tpu_custom_call.1} parent=1 // pred_check_branch
      %29 = sbr.rel (0) target = $region13
    $region12: #{tpu_custom_call.1} parent=1 // pred_region
      _
    $region13: #{tpu_custom_call.1} parent=1 // pred_fallthru
      _
    // Predicated region
    $region14: #{tpu_custom_call.1} parent=1 // pred_check
      _
    $region15: #{tpu_custom_call.1} parent=1 // pred_check_branch
      %31 = sbr.rel (0) target = $region17
    $region16: #{tpu_custom_call.1} parent=1 // pred_region
      _
    $region17: #{tpu_custom_call.1} parent=1 // pred_fallthru
      _
    // Predicated region
    $region18: #{tpu_custom_call.1} parent=1 // pred_check
      _
    $region19: #{tpu_custom_call.1} parent=1 // pred_check_branch
      %33 = sbr.rel (0) target = $region21
    $region20: #{tpu_custom_call.1} parent=1 // pred_region
      _
    $region21: #{tpu_custom_call.1} parent=1 // pred_fallthru
      _
    // Predicated region
    $region22: #{tpu_custom_call.1} parent=1 // pred_check
      _
    $region23: #{tpu_custom_call.1} parent=1 // pred_check_branch
      %35 = sbr.rel (0) target = $region25
    $region24: #{tpu_custom_call.1} parent=1 // pred_region
      _
    $region25: #{tpu_custom_call.1} parent=1 // pred_fallthru
      _
    // Predicated region
    $region26: #{tpu_custom_call.1} parent=1 // pred_check
      _
    $region27: #{tpu_custom_call.1} parent=1 // pred_check_branch
      %37 = sbr.rel (0) target = $region29
    $region28: #{tpu_custom_call.1} parent=1 // pred_region
      _
    $region29: #{tpu_custom_call.1} parent=1 // pred_fallthru
      _
    %s38 = sld [smem:[#allocation5]]
    %s39 = scalar_lea.vmem %s2, %s38
    %v40 = vld [vmem:[%s39] sm:$0x1]
    %vm41 = vcmask 253952
    %42 = vst.msk [vmem:[#allocation2] sm:$0x1] %vm41, %v40
    %s43 = sld [smem:[#allocation5 + $0x1]]
    %s44 = scalar_lea.vmem %s2, %s43
    %v45 = vld [vmem:[%s44] sm:$0x1]
    %46 = vst.msk [vmem:[#allocation2 + $0x1] sm:$0x1] %vm41, %v45
    %s47 = sld [smem:[#allocation5 + $0x2]]
    %s48 = scalar_lea.vmem %s2, %s47
    %v49 = vld [vmem:[%s48] sm:$0x1]
    %50 = vst.msk [vmem:[#allocation2 + $0x2] sm:$0x1] %vm41, %v49
    %s51 = sld [smem:[#allocation5 + $0x3]]
    %s52 = scalar_lea.vmem %s2, %s51
    %v53 = vld [vmem:[%s52] sm:$0x1]
    %54 = vst.msk [vmem:[#allocation2 + $0x3] sm:$0x1] %vm41, %v53
    %s55 = sld [smem:[#allocation5 + $0x4]]
    %s56 = scalar_lea.vmem %s2, %s55
    %v57 = vld [vmem:[%s56] sm:$0x1]
    %58 = vst.msk [vmem:[#allocation2 + $0x4] sm:$0x1] %vm41, %v57
    %s59 = sld [smem:[#allocation5 + $0x5]]
    %s60 = scalar_lea.vmem %s2, %s59
    %v61 = vld [vmem:[%s60] sm:$0x1]
    %62 = vst.msk [vmem:[#allocation2 + $0x5] sm:$0x1] %vm41, %v61
    %s63 = sld [smem:[#allocation5 + $0x6]]
    %s64 = scalar_lea.vmem %s2, %s63
    %v65 = vld [vmem:[%s64] sm:$0x1]
    %66 = vst.msk [vmem:[#allocation2 + $0x6] sm:$0x1] %vm41, %v65
    %s67 = sld [smem:[#allocation5 + $0x7]]
    %s68 = scalar_lea.vmem %s2, %s67
    %v69 = vld [vmem:[%s68] sm:$0x1]
    %70 = vst.msk [vmem:[#allocation2 + $0x7] sm:$0x1] %vm41, %v69
    %s71 = sld [smem:[#allocation5 + $0x8]]
    %s72 = scalar_lea.vmem %s2, %s71
    %v73 = vld [vmem:[%s72] sm:$0x1]
    %74 = vst.msk [vmem:[#allocation2 + $0x8] sm:$0x1] %vm41, %v73
    %s75 = sld [smem:[#allocation5 + $0x9]]
    %s76 = scalar_lea.vmem %s2, %s75
    %v77 = vld [vmem:[%s76] sm:$0x1]
    %78 = vst.msk [vmem:[#allocation2 + $0x9] sm:$0x1] %vm41, %v77
    %s79 = sld [smem:[#allocation5 + $0xa]]
    %s80 = scalar_lea.vmem %s2, %s79
    %v81 = vld [vmem:[%s80] sm:$0x1]
    %82 = vst.msk [vmem:[#allocation2 + $0xa] sm:$0x1] %vm41, %v81
    %s83 = sld [smem:[#allocation5 + $0xb]]
    %s84 = scalar_lea.vmem %s2, %s83
    %v85 = vld [vmem:[%s84] sm:$0x1]
    %86 = vst.msk [vmem:[#allocation2 + $0xb] sm:$0x1] %vm41, %v85
    %s87 = sld [smem:[#allocation5 + $0xc]]
    %s88 = scalar_lea.vmem %s2, %s87
    %v89 = vld [vmem:[%s88] sm:$0x1]
    %90 = vst.msk [vmem:[#allocation2 + $0xc] sm:$0x1] %vm41, %v89
    %s91 = sld [smem:[#allocation5 + $0xd]]
    %s92 = scalar_lea.vmem %s2, %s91
    %v93 = vld [vmem:[%s92] sm:$0x1]
    %94 = vst.msk [vmem:[#allocation2 + $0xd] sm:$0x1] %vm41, %v93
    %s95 = sld [smem:[#allocation5 + $0xe]]
    %s96 = scalar_lea.vmem %s2, %s95
    %v97 = vld [vmem:[%s96] sm:$0x1]
    %98 = vst.msk [vmem:[#allocation2 + $0xe] sm:$0x1] %vm41, %v97
    %s99 = sld [smem:[#allocation5 + $0xf]]
    %s100 = scalar_lea.vmem %s2, %s99
    %v101 = vld [vmem:[%s100] sm:$0x1]
    %102 = vst.msk [vmem:[#allocation2 + $0xf] sm:$0x1] %vm41, %v101
    %s103 = sld [smem:[#allocation5 + $0x10]]
    %s104 = scalar_lea.vmem %s2, %s103
    %v105 = vld [vmem:[%s104] sm:$0x1]
    %106 = vst.msk [vmem:[#allocation2 + $0x10] sm:$0x1] %vm41, %v105
    %s107 = sld [smem:[#allocation5 + $0x11]]
    %s108 = scalar_lea.vmem %s2, %s107
    %v109 = vld [vmem:[%s108] sm:$0x1]
    %110 = vst.msk [vmem:[#allocation2 + $0x11] sm:$0x1] %vm41, %v109
    %s111 = sld [smem:[#allocation5 + $0x12]]
    %s112 = scalar_lea.vmem %s2, %s111
    %v113 = vld [vmem:[%s112] sm:$0x1]
    %114 = vst.msk [vmem:[#allocation2 + $0x12] sm:$0x1] %vm41, %v113
    %s115 = sld [smem:[#allocation5 + $0x13]]
    %s116 = scalar_lea.vmem %s2, %s115
    %v117 = vld [vmem:[%s116] sm:$0x1]
    %118 = vst.msk [vmem:[#allocation2 + $0x13] sm:$0x1] %vm41, %v117
    %s119 = sld [smem:[#allocation5 + $0x14]]
    %s120 = scalar_lea.vmem %s2, %s119
    %v121 = vld [vmem:[%s120] sm:$0x1]
    %122 = vst.msk [vmem:[#allocation2 + $0x14] sm:$0x1] %vm41, %v121
    %s123 = sld [smem:[#allocation5 + $0x15]]
    %s124 = scalar_lea.vmem %s2, %s123
    %v125 = vld [vmem:[%s124] sm:$0x1]
    %126 = vst.msk [vmem:[#allocation2 + $0x15] sm:$0x1] %vm41, %v125
    %s127 = sld [smem:[#allocation5 + $0x16]]
    %s128 = scalar_lea.vmem %s2, %s127
    %v129 = vld [vmem:[%s128] sm:$0x1]
    %130 = vst.msk [vmem:[#allocation2 + $0x16] sm:$0x1] %vm41, %v129
    %s131 = sld [smem:[#allocation5 + $0x17]]
    %s132 = scalar_lea.vmem %s2, %s131
    %v133 = vld [vmem:[%s132] sm:$0x1]
    %134 = vst.msk [vmem:[#allocation2 + $0x17] sm:$0x1] %vm41, %v133
    %s135 = sld [smem:[#allocation5 + $0x18]]
    %s136 = scalar_lea.vmem %s2, %s135
    %v137 = vld [vmem:[%s136] sm:$0x1]
    %138 = vst.msk [vmem:[#allocation2 + $0x18] sm:$0x1] %vm41, %v137
    %s139 = sld [smem:[#allocation5 + $0x19]]
    %s140 = scalar_lea.vmem %s2, %s139
    %v141 = vld [vmem:[%s140] sm:$0x1]
    %142 = vst.msk [vmem:[#allocation2 + $0x19] sm:$0x1] %vm41, %v141
    %s143 = sld [smem:[#allocation5 + $0x1a]]
    %s144 = scalar_lea.vmem %s2, %s143
    %v145 = vld [vmem:[%s144] sm:$0x1]
    %146 = vst.msk [vmem:[#allocation2 + $0x1a] sm:$0x1] %vm41, %v145
    %s147 = sld [smem:[#allocation5 + $0x1b]]
    %s148 = scalar_lea.vmem %s2, %s147
    %v149 = vld [vmem:[%s148] sm:$0x1]
    %150 = vst.msk [vmem:[#allocation2 + $0x1b] sm:$0x1] %vm41, %v149
    %s151 = sld [smem:[#allocation5 + $0x1c]]
    %s152 = scalar_lea.vmem %s2, %s151
    %v153 = vld [vmem:[%s152] sm:$0x1]
    %154 = vst.msk [vmem:[#allocation2 + $0x1c] sm:$0x1] %vm41, %v153
    %s155 = sld [smem:[#allocation5 + $0x1d]]
    %s156 = scalar_lea.vmem %s2, %s155
    %v157 = vld [vmem:[%s156] sm:$0x1]
    %158 = vst.msk [vmem:[#allocation2 + $0x1d] sm:$0x1] %vm41, %v157
    %s159 = sld [smem:[#allocation5 + $0x1e]]
    %s160 = scalar_lea.vmem %s2, %s159
    %v161 = vld [vmem:[%s160] sm:$0x1]
    %162 = vst.msk [vmem:[#allocation2 + $0x1e] sm:$0x1] %vm41, %v161
    %s163 = sld [smem:[#allocation5 + $0x1f]]
    %s164 = scalar_lea.vmem %s2, %s163
    %v165 = vld [vmem:[%s164] sm:$0x1]
    %166 = vst.msk [vmem:[#allocation2 + $0x1f] sm:$0x1] %vm41, %v165
    %s167 = sld [smem:[#allocation5 + $0x20]]
    %s168 = scalar_lea.vmem %s2, %s167
    %v169 = vld [vmem:[%s168] sm:$0x1]
    %170 = vst.msk [vmem:[#allocation2 + $0x20] sm:$0x1] %vm41, %v169
    %s171 = sld [smem:[#allocation5 + $0x21]]
    %s172 = scalar_lea.vmem %s2, %s171
    %v173 = vld [vmem:[%s172] sm:$0x1]
    %174 = vst.msk [vmem:[#allocation2 + $0x21] sm:$0x1] %vm41, %v173
    %s175 = sld [smem:[#allocation5 + $0x22]]
    %s176 = scalar_lea.vmem %s2, %s175
    %v177 = vld [vmem:[%s176] sm:$0x1]
    %178 = vst.msk [vmem:[#allocation2 + $0x22] sm:$0x1] %vm41, %v177
    %s179 = sld [smem:[#allocation5 + $0x23]]
    %s180 = scalar_lea.vmem %s2, %s179
    %v181 = vld [vmem:[%s180] sm:$0x1]
    %182 = vst.msk [vmem:[#allocation2 + $0x23] sm:$0x1] %vm41, %v181
    %s183 = sld [smem:[#allocation5 + $0x24]]
    %s184 = scalar_lea.vmem %s2, %s183
    %v185 = vld [vmem:[%s184] sm:$0x1]
    %186 = vst.msk [vmem:[#allocation2 + $0x24] sm:$0x1] %vm41, %v185
    %s187 = sld [smem:[#allocation5 + $0x25]]
    %s188 = scalar_lea.vmem %s2, %s187
    %v189 = vld [vmem:[%s188] sm:$0x1]
    %190 = vst.msk [vmem:[#allocation2 + $0x25] sm:$0x1] %vm41, %v189
    %s191 = sld [smem:[#allocation5 + $0x26]]
    %s192 = scalar_lea.vmem %s2, %s191
    %v193 = vld [vmem:[%s192] sm:$0x1]
    %194 = vst.msk [vmem:[#allocation2 + $0x26] sm:$0x1] %vm41, %v193
    %s195 = sld [smem:[#allocation5 + $0x27]]
    %s196 = scalar_lea.vmem %s2, %s195
    %v197 = vld [vmem:[%s196] sm:$0x1]
    %198 = vst.msk [vmem:[#allocation2 + $0x27] sm:$0x1] %vm41, %v197
    %s199 = sld [smem:[#allocation5 + $0x28]]
    %s200 = scalar_lea.vmem %s2, %s199
    %v201 = vld [vmem:[%s200] sm:$0x1]
    %202 = vst.msk [vmem:[#allocation2 + $0x28] sm:$0x1] %vm41, %v201
    %s203 = sld [smem:[#allocation5 + $0x29]]
    %s204 = scalar_lea.vmem %s2, %s203
    %v205 = vld [vmem:[%s204] sm:$0x1]
    %206 = vst.msk [vmem:[#allocation2 + $0x29] sm:$0x1] %vm41, %v205
    %s207 = sld [smem:[#allocation5 + $0x2a]]
    %s208 = scalar_lea.vmem %s2, %s207
    %v209 = vld [vmem:[%s208] sm:$0x1]
    %210 = vst.msk [vmem:[#allocation2 + $0x2a] sm:$0x1] %vm41, %v209
    %s211 = sld [smem:[#allocation5 + $0x2b]]
    %s212 = scalar_lea.vmem %s2, %s211
    %v213 = vld [vmem:[%s212] sm:$0x1]
    %214 = vst.msk [vmem:[#allocation2 + $0x2b] sm:$0x1] %vm41, %v213
    %s215 = sld [smem:[#allocation5 + $0x2c]]
    %s216 = scalar_lea.vmem %s2, %s215
    %v217 = vld [vmem:[%s216] sm:$0x1]
    %218 = vst.msk [vmem:[#allocation2 + $0x2c] sm:$0x1] %vm41, %v217
    %s219 = sld [smem:[#allocation5 + $0x2d]]
    %s220 = scalar_lea.vmem %s2, %s219
    %v221 = vld [vmem:[%s220] sm:$0x1]
    %222 = vst.msk [vmem:[#allocation2 + $0x2d] sm:$0x1] %vm41, %v221
    %s223 = sld [smem:[#allocation5 + $0x2e]]
    %s224 = scalar_lea.vmem %s2, %s223
    %v225 = vld [vmem:[%s224] sm:$0x1]
    %226 = vst.msk [vmem:[#allocation2 + $0x2e] sm:$0x1] %vm41, %v225
    %s227 = sld [smem:[#allocation5 + $0x2f]]
    %s228 = scalar_lea.vmem %s2, %s227
    %v229 = vld [vmem:[%s228] sm:$0x1]
    %230 = vst.msk [vmem:[#allocation2 + $0x2f] sm:$0x1] %vm41, %v229
    %s231 = sld [smem:[#allocation5 + $0x30]]
    %s232 = scalar_lea.vmem %s2, %s231
    %v233 = vld [vmem:[%s232] sm:$0x1]
    %234 = vst.msk [vmem:[#allocation2 + $0x30] sm:$0x1] %vm41, %v233
    %s235 = sld [smem:[#allocation5 + $0x31]]
    %s236 = scalar_lea.vmem %s2, %s235
    %v237 = vld [vmem:[%s236] sm:$0x1]
    %238 = vst.msk [vmem:[#allocation2 + $0x31] sm:$0x1] %vm41, %v237
    %s239 = sld [smem:[#allocation5 + $0x32]]
    %s240 = scalar_lea.vmem %s2, %s239
    %v241 = vld [vmem:[%s240] sm:$0x1]
    %242 = vst.msk [vmem:[#allocation2 + $0x32] sm:$0x1] %vm41, %v241
    %s243 = sld [smem:[#allocation5 + $0x33]]
    %s244 = scalar_lea.vmem %s2, %s243
    %v245 = vld [vmem:[%s244] sm:$0x1]
    %246 = vst.msk [vmem:[#allocation2 + $0x33] sm:$0x1] %vm41, %v245
    %s247 = sld [smem:[#allocation5 + $0x34]]
    %s248 = scalar_lea.vmem %s2, %s247
    %v249 = vld [vmem:[%s248] sm:$0x1]
    %250 = vst.msk [vmem:[#allocation2 + $0x34] sm:$0x1] %vm41, %v249
    %s251 = sld [smem:[#allocation5 + $0x35]]
    %s252 = scalar_lea.vmem %s2, %s251
    %v253 = vld [vmem:[%s252] sm:$0x1]
    %254 = vst.msk [vmem:[#allocation2 + $0x35] sm:$0x1] %vm41, %v253
    %s255 = sld [smem:[#allocation5 + $0x36]]
    %s256 = scalar_lea.vmem %s2, %s255
    %v257 = vld [vmem:[%s256] sm:$0x1]
    %258 = vst.msk [vmem:[#allocation2 + $0x36] sm:$0x1] %vm41, %v257
    %s259 = sld [smem:[#allocation5 + $0x37]]
    %s260 = scalar_lea.vmem %s2, %s259
    %v261 = vld [vmem:[%s260] sm:$0x1]
    %262 = vst.msk [vmem:[#allocation2 + $0x37] sm:$0x1] %vm41, %v261
    %s263 = sld [smem:[#allocation5 + $0x38]]
    %s264 = scalar_lea.vmem %s2, %s263
    %v265 = vld [vmem:[%s264] sm:$0x1]
    %266 = vst.msk [vmem:[#allocation2 + $0x38] sm:$0x1] %vm41, %v265
    %s267 = sld [smem:[#allocation5 + $0x39]]
    %s268 = scalar_lea.vmem %s2, %s267
    %v269 = vld [vmem:[%s268] sm:$0x1]
    %270 = vst.msk [vmem:[#allocation2 + $0x39] sm:$0x1] %vm41, %v269
    %s271 = sld [smem:[#allocation5 + $0x3a]]
    %s272 = scalar_lea.vmem %s2, %s271
    %v273 = vld [vmem:[%s272] sm:$0x1]
    %274 = vst.msk [vmem:[#allocation2 + $0x3a] sm:$0x1] %vm41, %v273
    %s275 = sld [smem:[#allocation5 + $0x3b]]
    %s276 = scalar_lea.vmem %s2, %s275
    %v277 = vld [vmem:[%s276] sm:$0x1]
    %278 = vst.msk [vmem:[#allocation2 + $0x3b] sm:$0x1] %vm41, %v277
    %s279 = sld [smem:[#allocation5 + $0x3c]]
    %s280 = scalar_lea.vmem %s2, %s279
    %v281 = vld [vmem:[%s280] sm:$0x1]
    %282 = vst.msk [vmem:[#allocation2 + $0x3c] sm:$0x1] %vm41, %v281
    %s283 = sld [smem:[#allocation5 + $0x3d]]
    %s284 = scalar_lea.vmem %s2, %s283
    %v285 = vld [vmem:[%s284] sm:$0x1]
    %286 = vst.msk [vmem:[#allocation2 + $0x3d] sm:$0x1] %vm41, %v285
    %s287 = sld [smem:[#allocation5 + $0x3e]]
    %s288 = scalar_lea.vmem %s2, %s287
    %v289 = vld [vmem:[%s288] sm:$0x1]
    %290 = vst.msk [vmem:[#allocation2 + $0x3e] sm:$0x1] %vm41, %v289
    %s291 = sld [smem:[#allocation5 + $0x3f]]
    %s292 = scalar_lea.vmem %s2, %s291
    %v293 = vld [vmem:[%s292] sm:$0x1]
    %294 = vst.msk [vmem:[#allocation2 + $0x3f] sm:$0x1] %vm41, %v293
    %s295 = sld [smem:[#allocation5 + $0x40]]
    %s296 = scalar_lea.vmem %s2, %s295
    %v297 = vld [vmem:[%s296] sm:$0x1]
    %298 = vst.msk [vmem:[#allocation2 + $0x40] sm:$0x1] %vm41, %v297
    %s299 = sld [smem:[#allocation5 + $0x41]]
    %s300 = scalar_lea.vmem %s2, %s299
    %v301 = vld [vmem:[%s300] sm:$0x1]
    %302 = vst.msk [vmem:[#allocation2 + $0x41] sm:$0x1] %vm41, %v301
    %s303 = sld [smem:[#allocation5 + $0x42]]
    %s304 = scalar_lea.vmem %s2, %s303
    %v305 = vld [vmem:[%s304] sm:$0x1]
    %306 = vst.msk [vmem:[#allocation2 + $0x42] sm:$0x1] %vm41, %v305
    %s307 = sld [smem:[#allocation5 + $0x43]]
    %s308 = scalar_lea.vmem %s2, %s307
    %v309 = vld [vmem:[%s308] sm:$0x1]
    %310 = vst.msk [vmem:[#allocation2 + $0x43] sm:$0x1] %vm41, %v309
    %s311 = sld [smem:[#allocation5 + $0x44]]
    %s312 = scalar_lea.vmem %s2, %s311
    %v313 = vld [vmem:[%s312] sm:$0x1]
    %314 = vst.msk [vmem:[#allocation2 + $0x44] sm:$0x1] %vm41, %v313
    %s315 = sld [smem:[#allocation5 + $0x45]]
    %s316 = scalar_lea.vmem %s2, %s315
    %v317 = vld [vmem:[%s316] sm:$0x1]
    %318 = vst.msk [vmem:[#allocation2 + $0x45] sm:$0x1] %vm41, %v317
    %s319 = sld [smem:[#allocation5 + $0x46]]
    %s320 = scalar_lea.vmem %s2, %s319
    %v321 = vld [vmem:[%s320] sm:$0x1]
    %322 = vst.msk [vmem:[#allocation2 + $0x46] sm:$0x1] %vm41, %v321
    %s323 = sld [smem:[#allocation5 + $0x47]]
    %s324 = scalar_lea.vmem %s2, %s323
    %v325 = vld [vmem:[%s324] sm:$0x1]
    %326 = vst.msk [vmem:[#allocation2 + $0x47] sm:$0x1] %vm41, %v325
    %s327 = sld [smem:[#allocation5 + $0x48]]
    %s328 = scalar_lea.vmem %s2, %s327
    %v329 = vld [vmem:[%s328] sm:$0x1]
    %330 = vst.msk [vmem:[#allocation2 + $0x48] sm:$0x1] %vm41, %v329
    %s331 = sld [smem:[#allocation5 + $0x49]]
    %s332 = scalar_lea.vmem %s2, %s331
    %v333 = vld [vmem:[%s332] sm:$0x1]
    %334 = vst.msk [vmem:[#allocation2 + $0x49] sm:$0x1] %vm41, %v333
    %s335 = sld [smem:[#allocation5 + $0x4a]]
    %s336 = scalar_lea.vmem %s2, %s335
    %v337 = vld [vmem:[%s336] sm:$0x1]
    %338 = vst.msk [vmem:[#allocation2 + $0x4a] sm:$0x1] %vm41, %v337
    %s339 = sld [smem:[#allocation5 + $0x4b]]
    %s340 = scalar_lea.vmem %s2, %s339
    %v341 = vld [vmem:[%s340] sm:$0x1]
    %342 = vst.msk [vmem:[#allocation2 + $0x4b] sm:$0x1] %vm41, %v341
    %s343 = sld [smem:[#allocation5 + $0x4c]]
    %s344 = scalar_lea.vmem %s2, %s343
    %v345 = vld [vmem:[%s344] sm:$0x1]
    %346 = vst.msk [vmem:[#allocation2 + $0x4c] sm:$0x1] %vm41, %v345
    %s347 = sld [smem:[#allocation5 + $0x4d]]
    %s348 = scalar_lea.vmem %s2, %s347
    %v349 = vld [vmem:[%s348] sm:$0x1]
    %350 = vst.msk [vmem:[#allocation2 + $0x4d] sm:$0x1] %vm41, %v349
    %s351 = sld [smem:[#allocation5 + $0x4e]]
    %s352 = scalar_lea.vmem %s2, %s351
    %v353 = vld [vmem:[%s352] sm:$0x1]
    %354 = vst.msk [vmem:[#allocation2 + $0x4e] sm:$0x1] %vm41, %v353
    %s355 = sld [smem:[#allocation5 + $0x4f]]
    %s356 = scalar_lea.vmem %s2, %s355
    %v357 = vld [vmem:[%s356] sm:$0x1]
    %358 = vst.msk [vmem:[#allocation2 + $0x4f] sm:$0x1] %vm41, %v357
    %v359 = vld [vmem:[#allocation2] sm:$0xff]
    %v360 = vld [vmem:[#allocation2 + $0x8] sm:$0xff]
    %v361 = vld [vmem:[#allocation2 + $0x10] sm:$0xff]
    %v362 = vld [vmem:[#allocation2 + $0x18] sm:$0xff]
    %v363 = vld [vmem:[#allocation2 + $0x20] sm:$0xff]
    %v364 = vld [vmem:[#allocation2 + $0x28] sm:$0xff]
    %v365 = vld [vmem:[#allocation2 + $0x30] sm:$0xff]
    %v366 = vld [vmem:[#allocation2 + $0x38] sm:$0xff]
    %v367 = vld [vmem:[#allocation2 + $0x40] sm:$0xff]
    %v368 = vld [vmem:[#allocation2 + $0x48] sm:$0xff]
    %v369 = vld [vmem:[%s3] sm:$0xff]
    %v370 = vld [vmem:[%s3 + $0x8] sm:$0xff]
    %v371 = vld [vmem:[%s3 + $0x10] sm:$0xff]
    %v372 = vld [vmem:[%s3 + $0x18] sm:$0xff]
    %v373 = vld [vmem:[%s5] sm:$0x1]
    %v375 = vperm.slane %v373, 0
    %vm377 = vcmask 261120
    %v379 = vsel %vm377, %v359, 0
    %v382 = vsel %vm377, %v360, 0
    %v385 = vsel %vm377, %v361, 0
    %v388 = vsel %vm377, %v362, 0
    %v391 = vsel %vm377, %v363, 0
    %v394 = vsel %vm377, %v364, 0
    %v397 = vsel %vm377, %v365, 0
    %v400 = vsel %vm377, %v366, 0
    %v403 = vsel %vm377, %v367, 0
    %v406 = vsel %vm377, %v368, 0
    %408 = vmatpush.msra.mxu0 0.0
    %409 = vmatpush.msra.mxu0 0.0
    %410 = vmatpush.msra.mxu0 0.0
    %411 = vmatpush.msra.mxu0 0.0
    %412 = vmatpush.msra.mxu0 0.0
    %413 = vmatpush.msra.mxu0 0.0
    %414 = vmatpush.msra.mxu0 0.0
    %415 = vmatpush.msra.mxu0 0.0
    %416 = vmatpush.msra.mxu0 0.0
    %417 = vmatpush.msra.mxu0 0.0
    %418 = vmatpush.msra.mxu0 0.0
    %419 = vmatpush.msra.mxu0 0.0
    %420 = vmatpush.msra.mxu0 %v372
    %421 = vmatpush.msra.mxu0 %v371
    %422 = vmatpush.msra.mxu0 %v370
    %423 = vmatpush.msra.mxu0 %v369
    %424 = vmatmul.f32.gmra.mxu0 %v379
    %v425 = vpop.f32.mrf.mxu0
    %v426 = vadd.f32 %v375, %v425
    %427 = vmatmul.f32.gmra.mxu0 %v382
    %v428 = vpop.f32.mrf.mxu0
    %v429 = vadd.f32 %v375, %v428
    %430 = vmatmul.f32.gmra.mxu0 %v385
    %v431 = vpop.f32.mrf.mxu0
    %v432 = vadd.f32 %v375, %v431
    %433 = vmatmul.f32.gmra.mxu0 %v388
    %v434 = vpop.f32.mrf.mxu0
    %v435 = vadd.f32 %v375, %v434
    %436 = vmatmul.f32.gmra.mxu0 %v391
    %v437 = vpop.f32.mrf.mxu0
    %v438 = vadd.f32 %v375, %v437
    %439 = vmatmul.f32.gmra.mxu0 %v394
    %v440 = vpop.f32.mrf.mxu0
    %v441 = vadd.f32 %v375, %v440
    %442 = vmatmul.f32.gmra.mxu0 %v397
    %v443 = vpop.f32.mrf.mxu0
    %v444 = vadd.f32 %v375, %v443
    %445 = vmatmul.f32.gmra.mxu0 %v400
    %v446 = vpop.f32.mrf.mxu0
    %v447 = vadd.f32 %v375, %v446
    %448 = vmatmul.f32.gmra.mxu0 %v403
    %v449 = vpop.f32.mrf.mxu0
    %v450 = vadd.f32 %v375, %v449
    %451 = vmatmul.f32.gmra.mxu0 %v406
    %v452 = vpop.f32.mrf.mxu0
    %v453 = vadd.f32 %v375, %v452
    %454 = vdwg.mxu0
    %455 = vst [vmem:[#allocation3] sm:$0xff] %v426
    %456 = vst [vmem:[#allocation3 + $0x8] sm:$0xff] %v429
    %457 = vst [vmem:[#allocation3 + $0x10] sm:$0xff] %v432
    %458 = vst [vmem:[#allocation3 + $0x18] sm:$0xff] %v435
    %459 = vst [vmem:[#allocation3 + $0x20] sm:$0xff] %v438
    %460 = vst [vmem:[#allocation3 + $0x28] sm:$0xff] %v441
    %461 = vst [vmem:[#allocation3 + $0x30] sm:$0xff] %v444
    %462 = vst [vmem:[#allocation3 + $0x38] sm:$0xff] %v447
    %463 = vst [vmem:[#allocation3 + $0x40] sm:$0xff] %v450
    %464 = vst [vmem:[#allocation3 + $0x48] sm:$0xff] %v453
    %v465 = vld [vmem:[%s4] sm:$0xff]
    %v466 = vld [vmem:[%s4 + $0x8] sm:$0xff]
    %v467 = vld [vmem:[%s4 + $0x10] sm:$0xff]
    %v468 = vld [vmem:[%s4 + $0x18] sm:$0xff]
    %v469 = vld [vmem:[%s8] sm:$0xff]
    %s470 = sld [smem:[#allocation6]]
    %v471 = vld [vmem:[%s6] sm:$0xff]
    %v472 = vld [vmem:[%s7] sm:$0xff]
    // While loop
    $region30: #{tpu_custom_call.1} parent=1 // loop_pre_header
      _
    $region31: #{tpu_custom_call.1} parent=1 // loop_header
      %s474 = sphi 0, %s476
      %p475 = scmp.ge.s32.totalorder %s474, %s470
      %v479 = vphi %v471, %v566
      %v480 = vphi %v472, %v570
      %v481 = vphi 0.0, %v563
    $region32: #{tpu_custom_call.1} parent=1 // loop_header_branch
      %478 = sbr.rel (%p475) target = $region36
    $region33: #{tpu_custom_call.1} parent=1 // loop_body
      %s482 = smul.u32 %s474, 8
      %s483 = scalar_lea.vmem [#allocation3], %s482
      %v484 = vld [vmem:[%s483] sm:$0xff]
      %v486 = vsel %vm377, %v479, 0
      %488 = vmatpush.msra.mxu0 0.0
      %489 = vmatpush.msra.mxu0 0.0
      %490 = vmatpush.msra.mxu0 0.0
      %491 = vmatpush.msra.mxu0 0.0
      %492 = vmatpush.msra.mxu0 0.0
      %493 = vmatpush.msra.mxu0 0.0
      %494 = vmatpush.msra.mxu0 0.0
      %495 = vmatpush.msra.mxu0 0.0
      %496 = vmatpush.msra.mxu0 0.0
      %497 = vmatpush.msra.mxu0 0.0
      %498 = vmatpush.msra.mxu0 0.0
      %499 = vmatpush.msra.mxu0 0.0
      %500 = vmatpush.msra.mxu0 %v468
      %501 = vmatpush.msra.mxu0 %v467
      %502 = vmatpush.msra.mxu0 %v466
      %503 = vmatpush.msra.mxu0 %v465
      %504 = vmatmul.f32.gmra.mxu0 %v486
      %v505 = vpop.f32.mrf.mxu0
      %v506 = vadd.f32 0.0, %v505
      %507 = vdwg.mxu0
      %v508 = vadd.f32 %v484, %v506
      %v509 = vxor.u32 %v508, 2147483648
      %v510 = vmul.f32 %v509, 1.442695
      %v511 = vpow.pop %v510
      %v512 = vadd.f32 %v511, 1.0
      %v513 = vrcp.pop %v512
      %v514 = vmul.f32 %v512, %v513
      %v515 = vsub.f32 1.0, %v514
      %v516 = vmul.f32 %v513, %v515
      %v517 = vadd.f32 %v513, %v516
      %vm518 = vweird.f32 %v512
      %vm519 = vweird.f32 %v513
      %vm520 = vmor %vm518, %vm519
      %v521 = vsel %vm520, %v513, %v517
      %v522 = vand.u32 2147483647, %v512
      %vm523 = vcmp.eq.f32.partialorder %v522, 8.507059e+37
      %v524 = vand.u32 %v512, 2147483648
      %v525 = vor.u32 1.1754944e-38, %v524
      %v526 = vsel %vm523, %v525, %v521
      %v527 = vmul.f32 1.0, %v526
      %v528 = vtanh.pop %v508
      %530 = vrot.lane.b32.xlu0 %v480, 32
      %v531 = vpop.permute.xlu0 %530
      %v533 = vmul.f32 %v527, %v531
      %535 = vrot.lane.b32.xlu0 %v528, 32
      %v536 = vpop.permute.xlu0 %535
      %v538 = vmul.f32 %v527, %v536
      %540 = vrot.lane.b32.xlu0 %v538, 32
      %v541 = vpop.permute.xlu0 %540
      %v543 = vadd.f32 %v533, %v541
      %v544 = vtanh.pop %v543
      %546 = vrot.lane.b32.xlu0 %v544, 32
      %v547 = vpop.permute.xlu0 %546
      %v549 = vmul.f32 %v527, %v547
      %v550 = vstv %s474
      %vm551 = vcmp.lt.s32.totalorder %v550, %v469
      %v552 = vsel %vm551, 1, 0
      %553 = vset.pattern.permute.xlu0 0
      %554 = vperm.xlu0 %553, %v552
      %v555 = vpop.permute.xlu0 %554
      %vm556 = vcmp.eq.s32.totalorder %v555, 1
      %v557 = vsel %vm556, %v543, %v531
      %558 = vrot.lane.b32.xlu0 %v479, 64
      %v559 = vpop.permute.xlu0 %558
      %v561 = vsel %vm556, %v549, %v559
      %v562 = vsel %vm556, %v549, 0.0
      %v563 = vadd.f32 %v481, %v562
      %565 = vrot.lane.b32.xlu0 %v561, 64
      %v566 = vpop.permute.xlu0 %565
      %569 = vrot.lane.b32.xlu0 %v557, 96
      %v570 = vpop.permute.xlu0 %569
    $region34: #{tpu_custom_call.1} parent=1 // loop_footer
      %s476 = sadd.s32 %s474, 1
    $region35: #{tpu_custom_call.1} parent=1 // loop_footer_branch
      %473 = sbr.rel target = $region31
    $region36: #{tpu_custom_call.1} parent=1 // loop_exit
      _
    %s572 = scvt.s32.f32 %s470
    %v573 = vstv %s572
    %v574 = vrcp.pop %v573
    %v575 = vmul.f32 %v573, %v574
    %v576 = vsub.f32 1.0, %v575
    %v577 = vmul.f32 %v574, %v576
    %v578 = vadd.f32 %v574, %v577
    %vm579 = vweird.f32 %v573
    %vm580 = vweird.f32 %v574
    %vm581 = vmor %vm579, %vm580
    %v582 = vsel %vm581, %v574, %v578
    %v583 = vand.u32 2147483647, %v573
    %vm584 = vcmp.eq.f32.partialorder %v583, 8.507059e+37
    %v585 = vand.u32 %v573, 2147483648
    %v586 = vor.u32 1.1754944e-38, %v585
    %v587 = vsel %vm584, %v586, %v582
    %s588 = vtos %v587
    %v589 = vstv %s588
    %v590 = vmul.f32 %v481, %v589
    %592 = vrot.lane.b32.xlu0 %v590, 64
    %v593 = vpop.permute.xlu0 %592
    %595 = vst.msk [vmem:[#allocation7] sm:$0xff] %vm377, %v593
    // Predicated region
    $region37: #{tpu_custom_call.1} parent=1 // pred_check
      _
    $region38: #{tpu_custom_call.1} parent=1 // pred_check_branch
      %597 = sbr.rel (0) target = $region40
    $region39: #{tpu_custom_call.1} parent=1 // pred_region
      %599 = vsyncadd [#allocation8], 0
      %s601 = sshll.u32 [#allocation7], 4
      %s602 = int_to_ptr.vmem [resolvable:$true] %s601
      %s603 = sshll.u32 %s9, 4
      %s604 = int_to_ptr.hbm [resolvable:$true] %s603
      %606 = dma.vmem_to_hbm [thread:$0]  %s602, 128, %s604, [#allocation8]
    $region40: #{tpu_custom_call.1} parent=1 // pred_fallthru
      _
    // Predicated region
    $region41: #{tpu_custom_call.1} parent=1 // pred_check
      _
    $region42: #{tpu_custom_call.1} parent=1 // pred_check_branch
      %608 = sbr.rel (0) target = $region44
    $region43: #{tpu_custom_call.1} parent=1 // pred_region
      %610 = dma.done [#allocation8], 128
    $region44: #{tpu_custom_call.1} parent=1 // pred_fallthru
      _
    %611 = vsyncpa [#allocation8], 1

</llo_original>
